<compile_context>
chip_gen: v5e
topology: v5e:2x2
jax: 0.10.0
libtpu: 0.0.40
codegen_flags: <defaults>
</compile_context>

<pallas_src>
import functools
import numpy as np
import jax
import jax.numpy as jnp
from jax.experimental import pallas as pl
from jax.experimental.pallas import tpu as pltpu


def _lstm_fused_kernel(x_ref, wih_ref, bias_ref, whh_ref, h0_ref, c0_ref, wl_ref, bl_ref,
                       out_ref, hT_ref, cT_ref,
                       gx_vmem, hs_vmem,
                       *, hidden_size, seq_len, batch):
    """Whole NetworkMagenta forward in a single kernel invocation.

    x_ref   : (B, T, 388)  batch-first input (PyTorch layout, no wrapper transpose)
    wih_ref : (388, 4H)    W_ih^T
    bias_ref: (1, 4H)      b_ih + b_hh
    whh_ref : (H, 4H)      W_hh^T
    h0/c0   : (B, H)       initial state
    wl_ref  : (1, H)       Linear weight
    bl_ref  : (1, 1)       Linear bias
    out_ref : (T, B)       Linear outputs, time-major (wrapper transposes to (B,T,1))
    hT/cT   : (B, H)       final LSTM state
    gx_vmem : (T, B, 4H)   scratch: precomputed input-gate pre-activations (time-major)
    hs_vmem : (T, B, H)    scratch: all hidden states (stay in VMEM)
    """
    H, T, B = hidden_size, seq_len, batch

    # ---- Hoisted input projection (off the serial path): one MXU matmul per batch row
    # over ALL timesteps, stored time-major so the loop only does leading-axis reads.
    wih = wih_ref[...]
    bias = bias_ref[...]
    for b in range(B):                                   # static unroll (B is tiny)
        gx_vmem[:, b, :] = (
            jnp.dot(x_ref[b], wih, preferred_element_type=jnp.float32) + bias)

    whh = whh_ref[...]                                   # loop-invariant: load once

    def step(t, carry):
        h, c = carry
        # (B, 4H): precomputed input part + tiny recurrent MXU matmul.
        gates = gx_vmem[t] + jnp.dot(h, whh, preferred_element_type=jnp.float32)

        # PyTorch gate order: i, f, g, o
        i_g = jax.nn.sigmoid(gates[:, 0 * H:1 * H])
        f_g = jax.nn.sigmoid(gates[:, 1 * H:2 * H])
        g_g = jnp.tanh(gates[:, 2 * H:3 * H])
        o_g = jax.nn.sigmoid(gates[:, 3 * H:4 * H])

        c_new = f_g * c + i_g * g_g
        h_new = o_g * jnp.tanh(c_new)

        hs_vmem[t] = h_new                               # VMEM only; never leaves chip
        return (h_new, c_new)

    h_T, c_T = jax.lax.fori_loop(0, T, step,
                                 (h0_ref[...], c0_ref[...]), unroll=True)
    hT_ref[...] = h_T
    cT_ref[...] = c_T

    # ---- Hoisted output Linear (off the serial path): batched over all hidden states.
    hs = hs_vmem[...]                                    # (T, B, H)
    wl = wl_ref[...].reshape(1, 1, H)
    out_ref[...] = jnp.sum(hs * wl, axis=-1) + bl_ref[...]     # (T, B) + (1, 1)


def network_magenta_forward(params, x, hidden_in):
    """x: (B, T, 388) batch-first (like PyTorch).  hidden_in = (h0, c0), each (1, B, H)."""
    W_ih, W_hh, b_ih, b_hh, W_l, b_l = (params[k] for k in
                                        ("W_ih", "W_hh", "b_ih", "b_hh", "W_l", "b_l"))
    h0, c0 = hidden_in
    B, T, F = x.shape
    H = W_hh.shape[1]
    G = 4 * H

    wih_t = jnp.transpose(W_ih)                 # (388, 4H)
    whh_t = jnp.transpose(W_hh)                 # (H, 4H)
    bias = (b_ih + b_hh).reshape(1, G)
    wl = W_l.reshape(1, H)
    bl = b_l.reshape(1, 1)

    kernel = functools.partial(_lstm_fused_kernel, hidden_size=H, seq_len=T, batch=B)

    out_tb, hT, cT = pl.pallas_call(
        kernel,
        out_shape=(
            jax.ShapeDtypeStruct((T, B), jnp.float32),   # per-step Linear output
            jax.ShapeDtypeStruct((B, H), jnp.float32),   # h_T
            jax.ShapeDtypeStruct((B, H), jnp.float32),   # c_T
        ),
        grid_spec=pltpu.PrefetchScalarGridSpec(
            num_scalar_prefetch=0,
            grid=(1,),                                   # whole forward in one invocation
            in_specs=[
                pl.BlockSpec((B, T, F), lambda i: (0, 0, 0)),   # x (batch-first)
                pl.BlockSpec((F, G), lambda i: (0, 0)),         # W_ih^T
                pl.BlockSpec((1, G), lambda i: (0, 0)),         # b_ih + b_hh
                pl.BlockSpec((H, G), lambda i: (0, 0)),         # W_hh^T
                pl.BlockSpec((B, H), lambda i: (0, 0)),         # h0
                pl.BlockSpec((B, H), lambda i: (0, 0)),         # c0
                pl.BlockSpec((1, H), lambda i: (0, 0)),         # W_l
                pl.BlockSpec((1, 1), lambda i: (0, 0)),         # b_l
            ],
            out_specs=[
                pl.BlockSpec((T, B), lambda i: (0, 0)),
                pl.BlockSpec((B, H), lambda i: (0, 0)),
                pl.BlockSpec((B, H), lambda i: (0, 0)),
            ],
            scratch_shapes=[
                pltpu.VMEM((T, B, G), jnp.float32),      # gate pre-activations
                pltpu.VMEM((T, B, H), jnp.float32),      # hidden states
            ],
        ),
        compiler_params=pltpu.CompilerParams(
            dimension_semantics=("arbitrary",),          # sequential recurrence
        ),
    )(x, wih_t, bias, whh_t, h0[0], c0[0], wl, bl)

    out = jnp.transpose(out_tb)[:, :, None]              # (B, T, 1) batch-first
    return out, (hT[None], cT[None])


network_magenta_forward = jax.jit(network_magenta_forward)


def _reference_forward(params, x, hidden_in):
    """Pure-JAX reference (matches PyTorch LSTM + Linear semantics)."""
    W_ih, W_hh, b_ih, b_hh, W_l, b_l = (params[k] for k in
                                        ("W_ih", "W_hh", "b_ih", "b_hh", "W_l", "b_l"))
    h0, c0 = hidden_in

    def step(carry, x_t):
        h, c = carry
        gates = x_t @ W_ih.T + b_ih + h @ W_hh.T + b_hh
        i, f, g, o = jnp.split(gates, 4, axis=-1)
        i, f, g, o = jax.nn.sigmoid(i), jax.nn.sigmoid(f), jnp.tanh(g), jax.nn.sigmoid(o)
        c = f * c + i * g
        h = o * jnp.tanh(c)
        return (h, c), h

    (hT, cT), hs = jax.lax.scan(step, (h0[0], c0[0]), jnp.transpose(x, (1, 0, 2)))
    out = hs @ W_l.T + b_l                                # (T, B, 1)
    return jnp.transpose(out, (1, 0, 2)), (hT[None], cT[None])


def init_params(key, input_size, hidden_size):
    """Deterministic PyTorch-style uniform(-1/sqrt(H), 1/sqrt(H)) init."""
    H = hidden_size
    k = 1.0 / np.sqrt(H)
    keys = jax.random.split(key, 6)
    u = lambda kk, shape: jax.random.uniform(kk, shape, jnp.float32, -k, k)
    return dict(
        W_ih=u(keys[0], (4 * H, input_size)),
        W_hh=u(keys[1], (4 * H, H)),
        b_ih=u(keys[2], (4 * H,)),
        b_hh=u(keys[3], (4 * H,)),
        W_l=u(keys[4], (1, H)),
        b_l=u(keys[5], (1,)),
    )


if __name__ == "__main__":
    INPUT_SIZE = 388          # fixed by NetworkMagenta
    HIDDEN = 32
    B, T = 2, 8

    key = jax.random.PRNGKey(0)
    k_p, k_x, k_h, k_c = jax.random.split(key, 4)

    params = init_params(k_p, INPUT_SIZE, HIDDEN)
    x = jax.random.normal(k_x, (B, T, INPUT_SIZE), jnp.float32)
    h0 = jax.random.normal(k_h, (1, B, HIDDEN), jnp.float32)
    c0 = jax.random.normal(k_c, (1, B, HIDDEN), jnp.float32)

    out, (hT, cT) = network_magenta_forward(params, x, (h0, c0))
    jax.block_until_ready(out)

    ref_out, (ref_hT, ref_cT) = _reference_forward(params, x, (h0, c0))
    np.testing.assert_allclose(np.asarray(out), np.asarray(ref_out), rtol=1e-5, atol=1e-5)
    np.testing.assert_allclose(np.asarray(hT), np.asarray(ref_hT), rtol=1e-5, atol=1e-5)
    np.testing.assert_allclose(np.asarray(cT), np.asarray(ref_cT), rtol=1e-5, atol=1e-5)

    assert out.shape == (B, T, 1) and hT.shape == (1, B, HIDDEN) and cT.shape == (1, B, HIDDEN)
    print("KERNEL_OK")
</pallas_src>

<mosaic_0001>
module attributes {stable_mosaic.version = 11 : i64} {
  func.func @_lstm_fused_kernel(%arg0: i32, %arg1: memref<2x8x388xf32, #tpu.memory_space<vmem>>, %arg2: memref<388x128xf32, #tpu.memory_space<vmem>>, %arg3: memref<1x128xf32, #tpu.memory_space<vmem>>, %arg4: memref<32x128xf32, #tpu.memory_space<vmem>>, %arg5: memref<2x32xf32, #tpu.memory_space<vmem>>, %arg6: memref<2x32xf32, #tpu.memory_space<vmem>>, %arg7: memref<1x32xf32, #tpu.memory_space<vmem>>, %arg8: memref<1x1xf32, #tpu.memory_space<vmem>>, %arg9: memref<8x2xf32, #tpu.memory_space<vmem>>, %arg10: memref<2x32xf32, #tpu.memory_space<vmem>>, %arg11: memref<2x32xf32, #tpu.memory_space<vmem>>, %arg12: memref<8x2x128xf32, #tpu.memory_space<vmem>>, %arg13: memref<8x2x32xf32, #tpu.memory_space<vmem>>) attributes {dimension_semantics = [#tpu.dimension_semantics<arbitrary>], iteration_bounds = array<i64: 1>, scalar_prefetch = 0 : i64, scratch_operands = 2 : i64, tpu.core_type = #tpu.core_type<tc>, window_params = [{pipeline_mode = #tpu.pipeline_mode<synchronous>, transform_indices = @transform_0, window_bounds = array<i64: 2, 8, 388>}, {pipeline_mode = #tpu.pipeline_mode<synchronous>, transform_indices = @transform_1, window_bounds = array<i64: 388, 128>}, {pipeline_mode = #tpu.pipeline_mode<synchronous>, transform_indices = @transform_2, window_bounds = array<i64: 1, 128>}, {pipeline_mode = #tpu.pipeline_mode<synchronous>, transform_indices = @transform_3, window_bounds = array<i64: 32, 128>}, {pipeline_mode = #tpu.pipeline_mode<synchronous>, transform_indices = @transform_4, window_bounds = array<i64: 2, 32>}, {pipeline_mode = #tpu.pipeline_mode<synchronous>, transform_indices = @transform_5, window_bounds = array<i64: 2, 32>}, {pipeline_mode = #tpu.pipeline_mode<synchronous>, transform_indices = @transform_6, window_bounds = array<i64: 1, 32>}, {pipeline_mode = #tpu.pipeline_mode<synchronous>, transform_indices = @transform_7, window_bounds = array<i64: 1, 1>}, {pipeline_mode = #tpu.pipeline_mode<synchronous>, transform_indices = @transform_8, window_bounds = array<i64: 8, 2>}, {pipeline_mode = #tpu.pipeline_mode<synchronous>, transform_indices = @transform_9, window_bounds = array<i64: 2, 32>}, {pipeline_mode = #tpu.pipeline_mode<synchronous>, transform_indices = @transform_10, window_bounds = array<i64: 2, 32>}]} {
    %c0 = arith.constant 0 : index
    %c0_0 = arith.constant 0 : index
    %0 = vector.load %arg2[%c0, %c0_0] : memref<388x128xf32, #tpu.memory_space<vmem>>, vector<388x128xf32>
    %c0_1 = arith.constant 0 : index
    %c0_2 = arith.constant 0 : index
    %1 = vector.load %arg3[%c0_1, %c0_2] : memref<1x128xf32, #tpu.memory_space<vmem>>, vector<1x128xf32>
    %c0_3 = arith.constant 0 : index
    %c0_4 = arith.constant 0 : index
    %c0_5 = arith.constant 0 : index
    %2 = vector.load %arg1[%c0_3, %c0_4, %c0_5] : memref<2x8x388xf32, #tpu.memory_space<vmem>>, vector<1x8x388xf32>
    %3 = vector.shape_cast %2 : vector<1x8x388xf32> to vector<8x388xf32>
    %cst = arith.constant dense<0.000000e+00> : vector<8x128xf32>
    %4 = tpu.matmul %3, %0, %cst {dimension_numbers = #tpu.dot_dimension_numbers<[1], [0], [0], [1], [0, 0, 1, 1], [], []>} : vector<8x388xf32>, vector<388x128xf32>, vector<8x128xf32> -> vector<8x128xf32>
    %5 = vector.broadcast %1 : vector<1x128xf32> to vector<8x128xf32>
    %6 = arith.addf %4, %5 : vector<8x128xf32>
    %c0_6 = arith.constant 0 : index
    %c0_7 = arith.constant 0 : index
    %c0_8 = arith.constant 0 : index
    %7 = vector.load %arg12[%c0_6, %c0_7, %c0_8] : memref<8x2x128xf32, #tpu.memory_space<vmem>>, vector<8x1x128xf32>
    %8 = vector.shape_cast %7 : vector<8x1x128xf32> to vector<8x128xf32>
    %9 = vector.shape_cast %6 : vector<8x128xf32> to vector<8x1x128xf32>
    tpu.vector_store %arg12[%c0_6, %c0_7, %c0_8], %9 {strides = array<i32>} : memref<8x2x128xf32, #tpu.memory_space<vmem>>, vector<8x1x128xf32>,
    %c1 = arith.constant 1 : index
    %c0_9 = arith.constant 0 : index
    %c0_10 = arith.constant 0 : index
    %10 = vector.load %arg1[%c1, %c0_9, %c0_10] : memref<2x8x388xf32, #tpu.memory_space<vmem>>, vector<1x8x388xf32>
    %11 = vector.shape_cast %10 : vector<1x8x388xf32> to vector<8x388xf32>
    %cst_11 = arith.constant dense<0.000000e+00> : vector<8x128xf32>
    %12 = tpu.matmul %11, %0, %cst_11 {dimension_numbers = #tpu.dot_dimension_numbers<[1], [0], [0], [1], [0, 0, 1, 1], [], []>} : vector<8x388xf32>, vector<388x128xf32>, vector<8x128xf32> -> vector<8x128xf32>
    %13 = vector.broadcast %1 : vector<1x128xf32> to vector<8x128xf32>
    %14 = arith.addf %12, %13 : vector<8x128xf32>
    %c0_12 = arith.constant 0 : index
    %c1_13 = arith.constant 1 : index
    %c0_14 = arith.constant 0 : index
    %15 = vector.load %arg12[%c0_12, %c1_13, %c0_14] : memref<8x2x128xf32, #tpu.memory_space<vmem>>, vector<8x1x128xf32>
    %16 = vector.shape_cast %15 : vector<8x1x128xf32> to vector<8x128xf32>
    %17 = vector.shape_cast %14 : vector<8x128xf32> to vector<8x1x128xf32>
    tpu.vector_store %arg12[%c0_12, %c1_13, %c0_14], %17 {strides = array<i32>} : memref<8x2x128xf32, #tpu.memory_space<vmem>>, vector<8x1x128xf32>,
    %c0_15 = arith.constant 0 : index
    %c0_16 = arith.constant 0 : index
    %18 = vector.load %arg4[%c0_15, %c0_16] : memref<32x128xf32, #tpu.memory_space<vmem>>, vector<32x128xf32>
    %c0_17 = arith.constant 0 : index
    %c0_18 = arith.constant 0 : index
    %19 = vector.load %arg5[%c0_17, %c0_18] : memref<2x32xf32, #tpu.memory_space<vmem>>, vector<2x32xf32>
    %c0_19 = arith.constant 0 : index
    %c0_20 = arith.constant 0 : index
    %20 = vector.load %arg6[%c0_19, %c0_20] : memref<2x32xf32, #tpu.memory_space<vmem>>, vector<2x32xf32>
    %c0_i32 = arith.constant 0 : i32
    %21 = arith.index_cast %c0_i32 : i32 to index
    %c0_21 = arith.constant 0 : index
    %c0_22 = arith.constant 0 : index
    %22 = vector.load %arg12[%21, %c0_21, %c0_22] : memref<8x2x128xf32, #tpu.memory_space<vmem>>, vector<1x2x128xf32>
    %23 = vector.shape_cast %22 : vector<1x2x128xf32> to vector<2x128xf32>
    %cst_23 = arith.constant dense<0.000000e+00> : vector<2x128xf32>
    %24 = tpu.matmul %19, %18, %cst_23 {dimension_numbers = #tpu.dot_dimension_numbers<[1], [0], [0], [1], [0, 0, 1, 1], [], []>} : vector<2x32xf32>, vector<32x128xf32>, vector<2x128xf32> -> vector<2x128xf32>
    %25 = arith.addf %23, %24 : vector<2x128xf32>
    %26 = vector.extract_strided_slice %25 {offsets = [0, 0], sizes = [2, 32], strides = [1, 1]} : vector<2x128xf32> to vector<2x32xf32>
    %27 = arith.negf %26 : vector<2x32xf32>
    %28 = math.exp %27 : vector<2x32xf32>
    %cst_24 = arith.constant 1.000000e+00 : f32
    %29 = vector.broadcast %cst_24 : f32 to vector<2x32xf32>
    %30 = arith.addf %29, %28 : vector<2x32xf32>
    %31 = arith.divf %29, %30 : vector<2x32xf32>
    %32 = vector.extract_strided_slice %25 {offsets = [0, 32], sizes = [2, 32], strides = [1, 1]} : vector<2x128xf32> to vector<2x32xf32>
    %33 = arith.negf %32 : vector<2x32xf32>
    %34 = math.exp %33 : vector<2x32xf32>
    %cst_25 = arith.constant 1.000000e+00 : f32
    %35 = vector.broadcast %cst_25 : f32 to vector<2x32xf32>
    %36 = arith.addf %35, %34 : vector<2x32xf32>
    %37 = arith.divf %35, %36 : vector<2x32xf32>
    %38 = vector.extract_strided_slice %25 {offsets = [0, 64], sizes = [2, 32], strides = [1, 1]} : vector<2x128xf32> to vector<2x32xf32>
    %39 = math.tanh %38 : vector<2x32xf32>
    %40 = vector.extract_strided_slice %25 {offsets = [0, 96], sizes = [2, 32], strides = [1, 1]} : vector<2x128xf32> to vector<2x32xf32>
    %41 = arith.negf %40 : vector<2x32xf32>
    %42 = math.exp %41 : vector<2x32xf32>
    %cst_26 = arith.constant 1.000000e+00 : f32
    %43 = vector.broadcast %cst_26 : f32 to vector<2x32xf32>
    %44 = arith.addf %43, %42 : vector<2x32xf32>
    %45 = arith.divf %43, %44 : vector<2x32xf32>
    %46 = arith.mulf %37, %20 : vector<2x32xf32>
    %47 = arith.mulf %31, %39 : vector<2x32xf32>
    %48 = arith.addf %46, %47 : vector<2x32xf32>
    %49 = math.tanh %48 : vector<2x32xf32>
    %50 = arith.mulf %45, %49 : vector<2x32xf32>
    %51 = arith.index_cast %c0_i32 : i32 to index
    %c0_27 = arith.constant 0 : index
    %c0_28 = arith.constant 0 : index
    %52 = vector.load %arg13[%51, %c0_27, %c0_28] : memref<8x2x32xf32, #tpu.memory_space<vmem>>, vector<1x2x32xf32>
    %53 = vector.shape_cast %52 : vector<1x2x32xf32> to vector<2x32xf32>
    %54 = vector.shape_cast %50 : vector<2x32xf32> to vector<1x2x32xf32>
    tpu.vector_store %arg13[%51, %c0_27, %c0_28], %54 {strides = array<i32>} : memref<8x2x32xf32, #tpu.memory_space<vmem>>, vector<1x2x32xf32>,
    %c1_i32 = arith.constant 1 : i32
    %55 = arith.index_cast %c1_i32 : i32 to index
    %c0_29 = arith.constant 0 : index
    %c0_30 = arith.constant 0 : index
    %56 = vector.load %arg12[%55, %c0_29, %c0_30] : memref<8x2x128xf32, #tpu.memory_space<vmem>>, vector<1x2x128xf32>
    %57 = vector.shape_cast %56 : vector<1x2x128xf32> to vector<2x128xf32>
    %cst_31 = arith.constant dense<0.000000e+00> : vector<2x128xf32>
    %58 = tpu.matmul %50, %18, %cst_31 {dimension_numbers = #tpu.dot_dimension_numbers<[1], [0], [0], [1], [0, 0, 1, 1], [], []>} : vector<2x32xf32>, vector<32x128xf32>, vector<2x128xf32> -> vector<2x128xf32>
    %59 = arith.addf %57, %58 : vector<2x128xf32>
    %60 = vector.extract_strided_slice %59 {offsets = [0, 0], sizes = [2, 32], strides = [1, 1]} : vector<2x128xf32> to vector<2x32xf32>
    %61 = arith.negf %60 : vector<2x32xf32>
    %62 = math.exp %61 : vector<2x32xf32>
    %cst_32 = arith.constant 1.000000e+00 : f32
    %63 = vector.broadcast %cst_32 : f32 to vector<2x32xf32>
    %64 = arith.addf %63, %62 : vector<2x32xf32>
    %65 = arith.divf %63, %64 : vector<2x32xf32>
    %66 = vector.extract_strided_slice %59 {offsets = [0, 32], sizes = [2, 32], strides = [1, 1]} : vector<2x128xf32> to vector<2x32xf32>
    %67 = arith.negf %66 : vector<2x32xf32>
    %68 = math.exp %67 : vector<2x32xf32>
    %cst_33 = arith.constant 1.000000e+00 : f32
    %69 = vector.broadcast %cst_33 : f32 to vector<2x32xf32>
    %70 = arith.addf %69, %68 : vector<2x32xf32>
    %71 = arith.divf %69, %70 : vector<2x32xf32>
    %72 = vector.extract_strided_slice %59 {offsets = [0, 64], sizes = [2, 32], strides = [1, 1]} : vector<2x128xf32> to vector<2x32xf32>
    %73 = math.tanh %72 : vector<2x32xf32>
    %74 = vector.extract_strided_slice %59 {offsets = [0, 96], sizes = [2, 32], strides = [1, 1]} : vector<2x128xf32> to vector<2x32xf32>
    %75 = arith.negf %74 : vector<2x32xf32>
    %76 = math.exp %75 : vector<2x32xf32>
    %cst_34 = arith.constant 1.000000e+00 : f32
    %77 = vector.broadcast %cst_34 : f32 to vector<2x32xf32>
    %78 = arith.addf %77, %76 : vector<2x32xf32>
    %79 = arith.divf %77, %78 : vector<2x32xf32>
    %80 = arith.mulf %71, %48 : vector<2x32xf32>
    %81 = arith.mulf %65, %73 : vector<2x32xf32>
    %82 = arith.addf %80, %81 : vector<2x32xf32>
    %83 = math.tanh %82 : vector<2x32xf32>
    %84 = arith.mulf %79, %83 : vector<2x32xf32>
    %85 = arith.index_cast %c1_i32 : i32 to index
    %c0_35 = arith.constant 0 : index
    %c0_36 = arith.constant 0 : index
    %86 = vector.load %arg13[%85, %c0_35, %c0_36] : memref<8x2x32xf32, #tpu.memory_space<vmem>>, vector<1x2x32xf32>
    %87 = vector.shape_cast %86 : vector<1x2x32xf32> to vector<2x32xf32>
    %88 = vector.shape_cast %84 : vector<2x32xf32> to vector<1x2x32xf32>
    tpu.vector_store %arg13[%85, %c0_35, %c0_36], %88 {strides = array<i32>} : memref<8x2x32xf32, #tpu.memory_space<vmem>>, vector<1x2x32xf32>,
    %c2_i32 = arith.constant 2 : i32
    %89 = arith.index_cast %c2_i32 : i32 to index
    %c0_37 = arith.constant 0 : index
    %c0_38 = arith.constant 0 : index
    %90 = vector.load %arg12[%89, %c0_37, %c0_38] : memref<8x2x128xf32, #tpu.memory_space<vmem>>, vector<1x2x128xf32>
    %91 = vector.shape_cast %90 : vector<1x2x128xf32> to vector<2x128xf32>
    %cst_39 = arith.constant dense<0.000000e+00> : vector<2x128xf32>
    %92 = tpu.matmul %84, %18, %cst_39 {dimension_numbers = #tpu.dot_dimension_numbers<[1], [0], [0], [1], [0, 0, 1, 1], [], []>} : vector<2x32xf32>, vector<32x128xf32>, vector<2x128xf32> -> vector<2x128xf32>
    %93 = arith.addf %91, %92 : vector<2x128xf32>
    %94 = vector.extract_strided_slice %93 {offsets = [0, 0], sizes = [2, 32], strides = [1, 1]} : vector<2x128xf32> to vector<2x32xf32>
    %95 = arith.negf %94 : vector<2x32xf32>
    %96 = math.exp %95 : vector<2x32xf32>
    %cst_40 = arith.constant 1.000000e+00 : f32
    %97 = vector.broadcast %cst_40 : f32 to vector<2x32xf32>
    %98 = arith.addf %97, %96 : vector<2x32xf32>
    %99 = arith.divf %97, %98 : vector<2x32xf32>
    %100 = vector.extract_strided_slice %93 {offsets = [0, 32], sizes = [2, 32], strides = [1, 1]} : vector<2x128xf32> to vector<2x32xf32>
    %101 = arith.negf %100 : vector<2x32xf32>
    %102 = math.exp %101 : vector<2x32xf32>
    %cst_41 = arith.constant 1.000000e+00 : f32
    %103 = vector.broadcast %cst_41 : f32 to vector<2x32xf32>
    %104 = arith.addf %103, %102 : vector<2x32xf32>
    %105 = arith.divf %103, %104 : vector<2x32xf32>
    %106 = vector.extract_strided_slice %93 {offsets = [0, 64], sizes = [2, 32], strides = [1, 1]} : vector<2x128xf32> to vector<2x32xf32>
    %107 = math.tanh %106 : vector<2x32xf32>
    %108 = vector.extract_strided_slice %93 {offsets = [0, 96], sizes = [2, 32], strides = [1, 1]} : vector<2x128xf32> to vector<2x32xf32>
    %109 = arith.negf %108 : vector<2x32xf32>
    %110 = math.exp %109 : vector<2x32xf32>
    %cst_42 = arith.constant 1.000000e+00 : f32
    %111 = vector.broadcast %cst_42 : f32 to vector<2x32xf32>
    %112 = arith.addf %111, %110 : vector<2x32xf32>
    %113 = arith.divf %111, %112 : vector<2x32xf32>
    %114 = arith.mulf %105, %82 : vector<2x32xf32>
    %115 = arith.mulf %99, %107 : vector<2x32xf32>
    %116 = arith.addf %114, %115 : vector<2x32xf32>
    %117 = math.tanh %116 : vector<2x32xf32>
    %118 = arith.mulf %113, %117 : vector<2x32xf32>
    %119 = arith.index_cast %c2_i32 : i32 to index
    %c0_43 = arith.constant 0 : index
    %c0_44 = arith.constant 0 : index
    %120 = vector.load %arg13[%119, %c0_43, %c0_44] : memref<8x2x32xf32, #tpu.memory_space<vmem>>, vector<1x2x32xf32>
    %121 = vector.shape_cast %120 : vector<1x2x32xf32> to vector<2x32xf32>
    %122 = vector.shape_cast %118 : vector<2x32xf32> to vector<1x2x32xf32>
    tpu.vector_store %arg13[%119, %c0_43, %c0_44], %122 {strides = array<i32>} : memref<8x2x32xf32, #tpu.memory_space<vmem>>, vector<1x2x32xf32>,
    %c3_i32 = arith.constant 3 : i32
    %123 = arith.index_cast %c3_i32 : i32 to index
    %c0_45 = arith.constant 0 : index
    %c0_46 = arith.constant 0 : index
    %124 = vector.load %arg12[%123, %c0_45, %c0_46] : memref<8x2x128xf32, #tpu.memory_space<vmem>>, vector<1x2x128xf32>
    %125 = vector.shape_cast %124 : vector<1x2x128xf32> to vector<2x128xf32>
    %cst_47 = arith.constant dense<0.000000e+00> : vector<2x128xf32>
    %126 = tpu.matmul %118, %18, %cst_47 {dimension_numbers = #tpu.dot_dimension_numbers<[1], [0], [0], [1], [0, 0, 1, 1], [], []>} : vector<2x32xf32>, vector<32x128xf32>, vector<2x128xf32> -> vector<2x128xf32>
    %127 = arith.addf %125, %126 : vector<2x128xf32>
    %128 = vector.extract_strided_slice %127 {offsets = [0, 0], sizes = [2, 32], strides = [1, 1]} : vector<2x128xf32> to vector<2x32xf32>
    %129 = arith.negf %128 : vector<2x32xf32>
    %130 = math.exp %129 : vector<2x32xf32>
    %cst_48 = arith.constant 1.000000e+00 : f32
    %131 = vector.broadcast %cst_48 : f32 to vector<2x32xf32>
    %132 = arith.addf %131, %130 : vector<2x32xf32>
    %133 = arith.divf %131, %132 : vector<2x32xf32>
    %134 = vector.extract_strided_slice %127 {offsets = [0, 32], sizes = [2, 32], strides = [1, 1]} : vector<2x128xf32> to vector<2x32xf32>
    %135 = arith.negf %134 : vector<2x32xf32>
    %136 = math.exp %135 : vector<2x32xf32>
    %cst_49 = arith.constant 1.000000e+00 : f32
    %137 = vector.broadcast %cst_49 : f32 to vector<2x32xf32>
    %138 = arith.addf %137, %136 : vector<2x32xf32>
    %139 = arith.divf %137, %138 : vector<2x32xf32>
    %140 = vector.extract_strided_slice %127 {offsets = [0, 64], sizes = [2, 32], strides = [1, 1]} : vector<2x128xf32> to vector<2x32xf32>
    %141 = math.tanh %140 : vector<2x32xf32>
    %142 = vector.extract_strided_slice %127 {offsets = [0, 96], sizes = [2, 32], strides = [1, 1]} : vector<2x128xf32> to vector<2x32xf32>
    %143 = arith.negf %142 : vector<2x32xf32>
    %144 = math.exp %143 : vector<2x32xf32>
    %cst_50 = arith.constant 1.000000e+00 : f32
    %145 = vector.broadcast %cst_50 : f32 to vector<2x32xf32>
    %146 = arith.addf %145, %144 : vector<2x32xf32>
    %147 = arith.divf %145, %146 : vector<2x32xf32>
    %148 = arith.mulf %139, %116 : vector<2x32xf32>
    %149 = arith.mulf %133, %141 : vector<2x32xf32>
    %150 = arith.addf %148, %149 : vector<2x32xf32>
    %151 = math.tanh %150 : vector<2x32xf32>
    %152 = arith.mulf %147, %151 : vector<2x32xf32>
    %153 = arith.index_cast %c3_i32 : i32 to index
    %c0_51 = arith.constant 0 : index
    %c0_52 = arith.constant 0 : index
    %154 = vector.load %arg13[%153, %c0_51, %c0_52] : memref<8x2x32xf32, #tpu.memory_space<vmem>>, vector<1x2x32xf32>
    %155 = vector.shape_cast %154 : vector<1x2x32xf32> to vector<2x32xf32>
    %156 = vector.shape_cast %152 : vector<2x32xf32> to vector<1x2x32xf32>
    tpu.vector_store %arg13[%153, %c0_51, %c0_52], %156 {strides = array<i32>} : memref<8x2x32xf32, #tpu.memory_space<vmem>>, vector<1x2x32xf32>,
    %c4_i32 = arith.constant 4 : i32
    %157 = arith.index_cast %c4_i32 : i32 to index
    %c0_53 = arith.constant 0 : index
    %c0_54 = arith.constant 0 : index
    %158 = vector.load %arg12[%157, %c0_53, %c0_54] : memref<8x2x128xf32, #tpu.memory_space<vmem>>, vector<1x2x128xf32>
    %159 = vector.shape_cast %158 : vector<1x2x128xf32> to vector<2x128xf32>
    %cst_55 = arith.constant dense<0.000000e+00> : vector<2x128xf32>
    %160 = tpu.matmul %152, %18, %cst_55 {dimension_numbers = #tpu.dot_dimension_numbers<[1], [0], [0], [1], [0, 0, 1, 1], [], []>} : vector<2x32xf32>, vector<32x128xf32>, vector<2x128xf32> -> vector<2x128xf32>
    %161 = arith.addf %159, %160 : vector<2x128xf32>
    %162 = vector.extract_strided_slice %161 {offsets = [0, 0], sizes = [2, 32], strides = [1, 1]} : vector<2x128xf32> to vector<2x32xf32>
    %163 = arith.negf %162 : vector<2x32xf32>
    %164 = math.exp %163 : vector<2x32xf32>
    %cst_56 = arith.constant 1.000000e+00 : f32
    %165 = vector.broadcast %cst_56 : f32 to vector<2x32xf32>
    %166 = arith.addf %165, %164 : vector<2x32xf32>
    %167 = arith.divf %165, %166 : vector<2x32xf32>
    %168 = vector.extract_strided_slice %161 {offsets = [0, 32], sizes = [2, 32], strides = [1, 1]} : vector<2x128xf32> to vector<2x32xf32>
    %169 = arith.negf %168 : vector<2x32xf32>
    %170 = math.exp %169 : vector<2x32xf32>
    %cst_57 = arith.constant 1.000000e+00 : f32
    %171 = vector.broadcast %cst_57 : f32 to vector<2x32xf32>
    %172 = arith.addf %171, %170 : vector<2x32xf32>
    %173 = arith.divf %171, %172 : vector<2x32xf32>
    %174 = vector.extract_strided_slice %161 {offsets = [0, 64], sizes = [2, 32], strides = [1, 1]} : vector<2x128xf32> to vector<2x32xf32>
    %175 = math.tanh %174 : vector<2x32xf32>
    %176 = vector.extract_strided_slice %161 {offsets = [0, 96], sizes = [2, 32], strides = [1, 1]} : vector<2x128xf32> to vector<2x32xf32>
    %177 = arith.negf %176 : vector<2x32xf32>
    %178 = math.exp %177 : vector<2x32xf32>
    %cst_58 = arith.constant 1.000000e+00 : f32
    %179 = vector.broadcast %cst_58 : f32 to vector<2x32xf32>
    %180 = arith.addf %179, %178 : vector<2x32xf32>
    %181 = arith.divf %179, %180 : vector<2x32xf32>
    %182 = arith.mulf %173, %150 : vector<2x32xf32>
    %183 = arith.mulf %167, %175 : vector<2x32xf32>
    %184 = arith.addf %182, %183 : vector<2x32xf32>
    %185 = math.tanh %184 : vector<2x32xf32>
    %186 = arith.mulf %181, %185 : vector<2x32xf32>
    %187 = arith.index_cast %c4_i32 : i32 to index
    %c0_59 = arith.constant 0 : index
    %c0_60 = arith.constant 0 : index
    %188 = vector.load %arg13[%187, %c0_59, %c0_60] : memref<8x2x32xf32, #tpu.memory_space<vmem>>, vector<1x2x32xf32>
    %189 = vector.shape_cast %188 : vector<1x2x32xf32> to vector<2x32xf32>
    %190 = vector.shape_cast %186 : vector<2x32xf32> to vector<1x2x32xf32>
    tpu.vector_store %arg13[%187, %c0_59, %c0_60], %190 {strides = array<i32>} : memref<8x2x32xf32, #tpu.memory_space<vmem>>, vector<1x2x32xf32>,
    %c5_i32 = arith.constant 5 : i32
    %191 = arith.index_cast %c5_i32 : i32 to index
    %c0_61 = arith.constant 0 : index
    %c0_62 = arith.constant 0 : index
    %192 = vector.load %arg12[%191, %c0_61, %c0_62] : memref<8x2x128xf32, #tpu.memory_space<vmem>>, vector<1x2x128xf32>
    %193 = vector.shape_cast %192 : vector<1x2x128xf32> to vector<2x128xf32>
    %cst_63 = arith.constant dense<0.000000e+00> : vector<2x128xf32>
    %194 = tpu.matmul %186, %18, %cst_63 {dimension_numbers = #tpu.dot_dimension_numbers<[1], [0], [0], [1], [0, 0, 1, 1], [], []>} : vector<2x32xf32>, vector<32x128xf32>, vector<2x128xf32> -> vector<2x128xf32>
    %195 = arith.addf %193, %194 : vector<2x128xf32>
    %196 = vector.extract_strided_slice %195 {offsets = [0, 0], sizes = [2, 32], strides = [1, 1]} : vector<2x128xf32> to vector<2x32xf32>
    %197 = arith.negf %196 : vector<2x32xf32>
    %198 = math.exp %197 : vector<2x32xf32>
    %cst_64 = arith.constant 1.000000e+00 : f32
    %199 = vector.broadcast %cst_64 : f32 to vector<2x32xf32>
    %200 = arith.addf %199, %198 : vector<2x32xf32>
    %201 = arith.divf %199, %200 : vector<2x32xf32>
    %202 = vector.extract_strided_slice %195 {offsets = [0, 32], sizes = [2, 32], strides = [1, 1]} : vector<2x128xf32> to vector<2x32xf32>
    %203 = arith.negf %202 : vector<2x32xf32>
    %204 = math.exp %203 : vector<2x32xf32>
    %cst_65 = arith.constant 1.000000e+00 : f32
    %205 = vector.broadcast %cst_65 : f32 to vector<2x32xf32>
    %206 = arith.addf %205, %204 : vector<2x32xf32>
    %207 = arith.divf %205, %206 : vector<2x32xf32>
    %208 = vector.extract_strided_slice %195 {offsets = [0, 64], sizes = [2, 32], strides = [1, 1]} : vector<2x128xf32> to vector<2x32xf32>
    %209 = math.tanh %208 : vector<2x32xf32>
    %210 = vector.extract_strided_slice %195 {offsets = [0, 96], sizes = [2, 32], strides = [1, 1]} : vector<2x128xf32> to vector<2x32xf32>
    %211 = arith.negf %210 : vector<2x32xf32>
    %212 = math.exp %211 : vector<2x32xf32>
    %cst_66 = arith.constant 1.000000e+00 : f32
    %213 = vector.broadcast %cst_66 : f32 to vector<2x32xf32>
    %214 = arith.addf %213, %212 : vector<2x32xf32>
    %215 = arith.divf %213, %214 : vector<2x32xf32>
    %216 = arith.mulf %207, %184 : vector<2x32xf32>
    %217 = arith.mulf %201, %209 : vector<2x32xf32>
    %218 = arith.addf %216, %217 : vector<2x32xf32>
    %219 = math.tanh %218 : vector<2x32xf32>
    %220 = arith.mulf %215, %219 : vector<2x32xf32>
    %221 = arith.index_cast %c5_i32 : i32 to index
    %c0_67 = arith.constant 0 : index
    %c0_68 = arith.constant 0 : index
    %222 = vector.load %arg13[%221, %c0_67, %c0_68] : memref<8x2x32xf32, #tpu.memory_space<vmem>>, vector<1x2x32xf32>
    %223 = vector.shape_cast %222 : vector<1x2x32xf32> to vector<2x32xf32>
    %224 = vector.shape_cast %220 : vector<2x32xf32> to vector<1x2x32xf32>
    tpu.vector_store %arg13[%221, %c0_67, %c0_68], %224 {strides = array<i32>} : memref<8x2x32xf32, #tpu.memory_space<vmem>>, vector<1x2x32xf32>,
    %c6_i32 = arith.constant 6 : i32
    %225 = arith.index_cast %c6_i32 : i32 to index
    %c0_69 = arith.constant 0 : index
    %c0_70 = arith.constant 0 : index
    %226 = vector.load %arg12[%225, %c0_69, %c0_70] : memref<8x2x128xf32, #tpu.memory_space<vmem>>, vector<1x2x128xf32>
    %227 = vector.shape_cast %226 : vector<1x2x128xf32> to vector<2x128xf32>
    %cst_71 = arith.constant dense<0.000000e+00> : vector<2x128xf32>
    %228 = tpu.matmul %220, %18, %cst_71 {dimension_numbers = #tpu.dot_dimension_numbers<[1], [0], [0], [1], [0, 0, 1, 1], [], []>} : vector<2x32xf32>, vector<32x128xf32>, vector<2x128xf32> -> vector<2x128xf32>
    %229 = arith.addf %227, %228 : vector<2x128xf32>
    %230 = vector.extract_strided_slice %229 {offsets = [0, 0], sizes = [2, 32], strides = [1, 1]} : vector<2x128xf32> to vector<2x32xf32>
    %231 = arith.negf %230 : vector<2x32xf32>
    %232 = math.exp %231 : vector<2x32xf32>
    %cst_72 = arith.constant 1.000000e+00 : f32
    %233 = vector.broadcast %cst_72 : f32 to vector<2x32xf32>
    %234 = arith.addf %233, %232 : vector<2x32xf32>
    %235 = arith.divf %233, %234 : vector<2x32xf32>
    %236 = vector.extract_strided_slice %229 {offsets = [0, 32], sizes = [2, 32], strides = [1, 1]} : vector<2x128xf32> to vector<2x32xf32>
    %237 = arith.negf %236 : vector<2x32xf32>
    %238 = math.exp %237 : vector<2x32xf32>
    %cst_73 = arith.constant 1.000000e+00 : f32
    %239 = vector.broadcast %cst_73 : f32 to vector<2x32xf32>
    %240 = arith.addf %239, %238 : vector<2x32xf32>
    %241 = arith.divf %239, %240 : vector<2x32xf32>
    %242 = vector.extract_strided_slice %229 {offsets = [0, 64], sizes = [2, 32], strides = [1, 1]} : vector<2x128xf32> to vector<2x32xf32>
    %243 = math.tanh %242 : vector<2x32xf32>
    %244 = vector.extract_strided_slice %229 {offsets = [0, 96], sizes = [2, 32], strides = [1, 1]} : vector<2x128xf32> to vector<2x32xf32>
    %245 = arith.negf %244 : vector<2x32xf32>
    %246 = math.exp %245 : vector<2x32xf32>
    %cst_74 = arith.constant 1.000000e+00 : f32
    %247 = vector.broadcast %cst_74 : f32 to vector<2x32xf32>
    %248 = arith.addf %247, %246 : vector<2x32xf32>
    %249 = arith.divf %247, %248 : vector<2x32xf32>
    %250 = arith.mulf %241, %218 : vector<2x32xf32>
    %251 = arith.mulf %235, %243 : vector<2x32xf32>
    %252 = arith.addf %250, %251 : vector<2x32xf32>
    %253 = math.tanh %252 : vector<2x32xf32>
    %254 = arith.mulf %249, %253 : vector<2x32xf32>
    %255 = arith.index_cast %c6_i32 : i32 to index
    %c0_75 = arith.constant 0 : index
    %c0_76 = arith.constant 0 : index
    %256 = vector.load %arg13[%255, %c0_75, %c0_76] : memref<8x2x32xf32, #tpu.memory_space<vmem>>, vector<1x2x32xf32>
    %257 = vector.shape_cast %256 : vector<1x2x32xf32> to vector<2x32xf32>
    %258 = vector.shape_cast %254 : vector<2x32xf32> to vector<1x2x32xf32>
    tpu.vector_store %arg13[%255, %c0_75, %c0_76], %258 {strides = array<i32>} : memref<8x2x32xf32, #tpu.memory_space<vmem>>, vector<1x2x32xf32>,
    %c7_i32 = arith.constant 7 : i32
    %259 = arith.index_cast %c7_i32 : i32 to index
    %c0_77 = arith.constant 0 : index
    %c0_78 = arith.constant 0 : index
    %260 = vector.load %arg12[%259, %c0_77, %c0_78] : memref<8x2x128xf32, #tpu.memory_space<vmem>>, vector<1x2x128xf32>
    %261 = vector.shape_cast %260 : vector<1x2x128xf32> to vector<2x128xf32>
    %cst_79 = arith.constant dense<0.000000e+00> : vector<2x128xf32>
    %262 = tpu.matmul %254, %18, %cst_79 {dimension_numbers = #tpu.dot_dimension_numbers<[1], [0], [0], [1], [0, 0, 1, 1], [], []>} : vector<2x32xf32>, vector<32x128xf32>, vector<2x128xf32> -> vector<2x128xf32>
    %263 = arith.addf %261, %262 : vector<2x128xf32>
    %264 = vector.extract_strided_slice %263 {offsets = [0, 0], sizes = [2, 32], strides = [1, 1]} : vector<2x128xf32> to vector<2x32xf32>
    %265 = arith.negf %264 : vector<2x32xf32>
    %266 = math.exp %265 : vector<2x32xf32>
    %cst_80 = arith.constant 1.000000e+00 : f32
    %267 = vector.broadcast %cst_80 : f32 to vector<2x32xf32>
    %268 = arith.addf %267, %266 : vector<2x32xf32>
    %269 = arith.divf %267, %268 : vector<2x32xf32>
    %270 = vector.extract_strided_slice %263 {offsets = [0, 32], sizes = [2, 32], strides = [1, 1]} : vector<2x128xf32> to vector<2x32xf32>
    %271 = arith.negf %270 : vector<2x32xf32>
    %272 = math.exp %271 : vector<2x32xf32>
    %cst_81 = arith.constant 1.000000e+00 : f32
    %273 = vector.broadcast %cst_81 : f32 to vector<2x32xf32>
    %274 = arith.addf %273, %272 : vector<2x32xf32>
    %275 = arith.divf %273, %274 : vector<2x32xf32>
    %276 = vector.extract_strided_slice %263 {offsets = [0, 64], sizes = [2, 32], strides = [1, 1]} : vector<2x128xf32> to vector<2x32xf32>
    %277 = math.tanh %276 : vector<2x32xf32>
    %278 = vector.extract_strided_slice %263 {offsets = [0, 96], sizes = [2, 32], strides = [1, 1]} : vector<2x128xf32> to vector<2x32xf32>
    %279 = arith.negf %278 : vector<2x32xf32>
    %280 = math.exp %279 : vector<2x32xf32>
    %cst_82 = arith.constant 1.000000e+00 : f32
    %281 = vector.broadcast %cst_82 : f32 to vector<2x32xf32>
    %282 = arith.addf %281, %280 : vector<2x32xf32>
    %283 = arith.divf %281, %282 : vector<2x32xf32>
    %284 = arith.mulf %275, %252 : vector<2x32xf32>
    %285 = arith.mulf %269, %277 : vector<2x32xf32>
    %286 = arith.addf %284, %285 : vector<2x32xf32>
    %287 = math.tanh %286 : vector<2x32xf32>
    %288 = arith.mulf %283, %287 : vector<2x32xf32>
    %289 = arith.index_cast %c7_i32 : i32 to index
    %c0_83 = arith.constant 0 : index
    %c0_84 = arith.constant 0 : index
    %290 = vector.load %arg13[%289, %c0_83, %c0_84] : memref<8x2x32xf32, #tpu.memory_space<vmem>>, vector<1x2x32xf32>
    %291 = vector.shape_cast %290 : vector<1x2x32xf32> to vector<2x32xf32>
    %292 = vector.shape_cast %288 : vector<2x32xf32> to vector<1x2x32xf32>
    tpu.vector_store %arg13[%289, %c0_83, %c0_84], %292 {strides = array<i32>} : memref<8x2x32xf32, #tpu.memory_space<vmem>>, vector<1x2x32xf32>,
    %c8_i32 = arith.constant 8 : i32
    %c0_85 = arith.constant 0 : index
    %c0_86 = arith.constant 0 : index
    %293 = vector.load %arg10[%c0_85, %c0_86] : memref<2x32xf32, #tpu.memory_space<vmem>>, vector<2x32xf32>
    tpu.vector_store %arg10[%c0_85, %c0_86], %288 {strides = array<i32>} : memref<2x32xf32, #tpu.memory_space<vmem>>, vector<2x32xf32>,
    %c0_87 = arith.constant 0 : index
    %c0_88 = arith.constant 0 : index
    %294 = vector.load %arg11[%c0_87, %c0_88] : memref<2x32xf32, #tpu.memory_space<vmem>>, vector<2x32xf32>
    tpu.vector_store %arg11[%c0_87, %c0_88], %286 {strides = array<i32>} : memref<2x32xf32, #tpu.memory_space<vmem>>, vector<2x32xf32>,
    %c0_89 = arith.constant 0 : index
    %c0_90 = arith.constant 0 : index
    %c0_91 = arith.constant 0 : index
    %295 = vector.load %arg13[%c0_89, %c0_90, %c0_91] : memref<8x2x32xf32, #tpu.memory_space<vmem>>, vector<8x2x32xf32>
    %c0_92 = arith.constant 0 : index
    %c0_93 = arith.constant 0 : index
    %296 = vector.load %arg7[%c0_92, %c0_93] : memref<1x32xf32, #tpu.memory_space<vmem>>, vector<1x32xf32>
    %297 = vector.shape_cast %296 : vector<1x32xf32> to vector<1x1x32xf32>
    %298 = vector.broadcast %297 : vector<1x1x32xf32> to vector<8x2x32xf32>
    %299 = arith.mulf %295, %298 : vector<8x2x32xf32>
    %cst_94 = arith.constant dense<0.000000e+00> : vector<8x2xf32>
    %300 = vector.multi_reduction <add>, %299, %cst_94 [2] : vector<8x2x32xf32> to vector<8x2xf32>
    %c0_95 = arith.constant 0 : index
    %c0_96 = arith.constant 0 : index
    %301 = vector.load %arg8[%c0_95, %c0_96] : memref<1x1xf32, #tpu.memory_space<vmem>>, vector<1x1xf32>
    %302 = vector.broadcast %301 : vector<1x1xf32> to vector<8x2xf32>
    %303 = arith.addf %300, %302 : vector<8x2xf32>
    %c0_97 = arith.constant 0 : index
    %c0_98 = arith.constant 0 : index
    %304 = vector.load %arg9[%c0_97, %c0_98] : memref<8x2xf32, #tpu.memory_space<vmem>>, vector<8x2xf32>
    tpu.vector_store %arg9[%c0_97, %c0_98], %303 {strides = array<i32>} : memref<8x2xf32, #tpu.memory_space<vmem>>, vector<8x2xf32>,
    return
  }
  func.func @transform_0(%arg0: i32) -> (i32, i32, i32) {
    %c0_i32 = arith.constant 0 : i32
    %c0_i32_0 = arith.constant 0 : i32
    %c0_i32_1 = arith.constant 0 : i32
    %c0_i32_2 = arith.constant 0 : i32
    return %c0_i32, %c0_i32_0, %c0_i32_1 : i32, i32, i32
  }
  func.func @transform_1(%arg0: i32) -> (i32, i32) {
    %c0_i32 = arith.constant 0 : i32
    %c0_i32_0 = arith.constant 0 : i32
    %c0_i32_1 = arith.constant 0 : i32
    return %c0_i32, %c0_i32_0 : i32, i32
  }
  func.func @transform_2(%arg0: i32) -> (i32, i32) {
    %c0_i32 = arith.constant 0 : i32
    %c0_i32_0 = arith.constant 0 : i32
    %c0_i32_1 = arith.constant 0 : i32
    return %c0_i32, %c0_i32_0 : i32, i32
  }
  func.func @transform_3(%arg0: i32) -> (i32, i32) {
    %c0_i32 = arith.constant 0 : i32
    %c0_i32_0 = arith.constant 0 : i32
    %c0_i32_1 = arith.constant 0 : i32
    return %c0_i32, %c0_i32_0 : i32, i32
  }
  func.func @transform_4(%arg0: i32) -> (i32, i32) {
    %c0_i32 = arith.constant 0 : i32
    %c0_i32_0 = arith.constant 0 : i32
    %c0_i32_1 = arith.constant 0 : i32
    return %c0_i32, %c0_i32_0 : i32, i32
  }
  func.func @transform_5(%arg0: i32) -> (i32, i32) {
    %c0_i32 = arith.constant 0 : i32
    %c0_i32_0 = arith.constant 0 : i32
    %c0_i32_1 = arith.constant 0 : i32
    return %c0_i32, %c0_i32_0 : i32, i32
  }
  func.func @transform_6(%arg0: i32) -> (i32, i32) {
    %c0_i32 = arith.constant 0 : i32
    %c0_i32_0 = arith.constant 0 : i32
    %c0_i32_1 = arith.constant 0 : i32
    return %c0_i32, %c0_i32_0 : i32, i32
  }
  func.func @transform_7(%arg0: i32) -> (i32, i32) {
    %c0_i32 = arith.constant 0 : i32
    %c0_i32_0 = arith.constant 0 : i32
    %c0_i32_1 = arith.constant 0 : i32
    return %c0_i32, %c0_i32_0 : i32, i32
  }
  func.func @transform_8(%arg0: i32) -> (i32, i32) {
    %c0_i32 = arith.constant 0 : i32
    %c0_i32_0 = arith.constant 0 : i32
    %c0_i32_1 = arith.constant 0 : i32
    return %c0_i32, %c0_i32_0 : i32, i32
  }
  func.func @transform_9(%arg0: i32) -> (i32, i32) {
    %c0_i32 = arith.constant 0 : i32
    %c0_i32_0 = arith.constant 0 : i32
    %c0_i32_1 = arith.constant 0 : i32
    return %c0_i32, %c0_i32_0 : i32, i32
  }
  func.func @transform_10(%arg0: i32) -> (i32, i32) {
    %c0_i32 = arith.constant 0 : i32
    %c0_i32_0 = arith.constant 0 : i32
    %c0_i32_1 = arith.constant 0 : i32
    return %c0_i32, %c0_i32_0 : i32, i32
  }
}

</mosaic_0001>

<llo_original>
// kernel: network_magenta_forward.1
$region0: #{network_magenta_forward.1}
  #allocation0 [shape = 'u32[]', space=smem, size = 0x4, offset = 0x4, fixed_abs, tag = 'smem constant byte address 0x4 - core index']
  #allocation1 [shape = 'u32[72,128]{1,0:T(1,128)}', space=vmem, size = 0x9000, scoped, tag = 'internal scratch']
  #allocation2 [shape = 'f32[8,2,128]{2,1,0:T(2,128)}', space=vmem, size = 0x2000, scoped, tag = 'scratch operand']
  #allocation3 [shape = 'f32[8,2,32]{2,1,0:T(2,128)}', space=vmem, size = 0x2000, scoped, tag = 'scratch operand']
  #allocation4 [shape = 'f32[1,1]{1,0:T(1,128)S(1)}', space=vmem, size = 0x200, scoped, tag = 'scoped memory for network_magenta_forward.1']
  %s0 = inlined_call_operand.hbm [shape: f32[2,8,388], index: 0, kind: input, shape index: {}]
  %s1 = inlined_call_operand.hbm [shape: f32[388,128], index: 1, kind: input, shape index: {}]
  %s2 = inlined_call_operand.vmem [shape: f32[1,128], index: 2, kind: input, shape index: {}]
  %s3 = inlined_call_operand.hbm [shape: f32[32,128], index: 3, kind: input, shape index: {}]
  %s4 = inlined_call_operand.vmem [shape: f32[2,32], index: 4, kind: input, shape index: {}]
  %s5 = inlined_call_operand.vmem [shape: f32[2,32], index: 5, kind: input, shape index: {}]
  %s6 = inlined_call_operand.vmem [shape: f32[1,32], index: 6, kind: input, shape index: {}]
  %s7 = inlined_call_operand.<no memory space> [shape: f32[1,1], index: 7, kind: input, shape index: {}]
  %s8 = inlined_call_operand.vmem [shape: f32[8,2], index: 8, kind: output, shape index: {0}]
  %s9 = inlined_call_operand.hbm [shape: f32[2,32], index: 9, kind: output, shape index: {1}]
  %s10 = inlined_call_operand.hbm [shape: f32[2,32], index: 10, kind: output, shape index: {2}]
  %11 = xla_tuple %s8, %s9, %s10
  %s12 = sld [smem:[#allocation0]]
  $region70: #{network_magenta_forward.1} parent=0
    _
  %s14 = ssub.s32 1, %s12
  %s15 = scalar_select 0, %s14, %s12
  %v16 = vstv %s7
  %17 = vst [vmem:[#allocation4] sm:$0x1] %v16
  $region1: #{network_magenta_forward.1} parent=0
    #allocation5 [shape = 'u8[32768]{0}', space=vmem, size = 0x8000, scoped, tag = 'input window, operand 0, single buffered']
    #allocation6 [shape = 's32[1]{0}', space=sflag, size = 0x4, scoped, tag = 'scoped memory for network_magenta_forward.1']
    #allocation7 [shape = 's32[1]{0}', space=sflag, size = 0x4, scoped, tag = 'scoped memory for network_magenta_forward.1']
    #allocation8 [shape = 'u8[200704]{0}', space=vmem, size = 0x31000, scoped, tag = 'input window, operand 1, single buffered']
    #allocation9 [shape = 's32[1]{0}', space=sflag, size = 0x4, scoped, tag = 'scoped memory for network_magenta_forward.1']
    #allocation10 [shape = 'u8[16384]{0}', space=vmem, size = 0x4000, scoped, tag = 'input window, operand 3, single buffered']
    #allocation11 [shape = 'u8[1024]{0}', space=vmem, size = 0x400, scoped, tag = 'output window, operand 1, single buffered']
    #allocation12 [shape = 'u8[1024]{0}', space=vmem, size = 0x400, scoped, tag = 'output window, operand 2, single buffered']
    #allocation13 [shape = 's32[1]{0}', space=sflag, size = 0x4, scoped, tag = 'scoped memory for network_magenta_forward.1']
    %18 = vsyncpa [#allocation6], 0
    %19 = vsyncpa [#allocation9], 0
    %20 = vsyncpa [#allocation7], 0
    %21 = vsyncpa [#allocation13], 0
    // Predicated region
    $region2: #{network_magenta_forward.1} parent=1 // pred_check
      _
    $region3: #{network_magenta_forward.1} parent=1 // pred_check_branch
      %23 = sbr.rel (0) target = $region5
    $region4: #{network_magenta_forward.1} parent=1 // pred_region
      %25 = vsyncadd [#allocation6], 0
      %s26 = sshll.u32 %s0, 4
      %s27 = int_to_ptr.hbm [resolvable:$true] %s26
      %s28 = sshll.u32 [#allocation5], 4
      %s29 = int_to_ptr.vmem [resolvable:$true] %s28
      %34 = dma.hbm_to_vmem [thread:$0]  %s27, 1024, %s29, [#allocation6], 512, 512, 32
    $region5: #{network_magenta_forward.1} parent=1 // pred_fallthru
      _
    // Predicated region
    $region6: #{network_magenta_forward.1} parent=1 // pred_check
      _
    $region7: #{network_magenta_forward.1} parent=1 // pred_check_branch
      %36 = sbr.rel (0) target = $region9
    $region8: #{network_magenta_forward.1} parent=1 // pred_region
      %38 = vsyncadd [#allocation9], 0
      %s39 = sshll.u32 %s1, 4
      %s40 = int_to_ptr.hbm [resolvable:$true] %s39
      %s41 = sshll.u32 [#allocation8], 4
      %s42 = int_to_ptr.vmem [resolvable:$true] %s41
      %47 = dma.hbm_to_vmem [thread:$0]  %s40, 6272, %s42, [#allocation9], 128, 128, 8
    $region9: #{network_magenta_forward.1} parent=1 // pred_fallthru
      _
    // Predicated region
    $region10: #{network_magenta_forward.1} parent=1 // pred_check
      _
    $region11: #{network_magenta_forward.1} parent=1 // pred_check_branch
      %49 = sbr.rel (0) target = $region13
    $region12: #{network_magenta_forward.1} parent=1 // pred_region
      _
    $region13: #{network_magenta_forward.1} parent=1 // pred_fallthru
      _
    // Predicated region
    $region14: #{network_magenta_forward.1} parent=1 // pred_check
      _
    $region15: #{network_magenta_forward.1} parent=1 // pred_check_branch
      %51 = sbr.rel (0) target = $region17
    $region16: #{network_magenta_forward.1} parent=1 // pred_region
      %53 = vsyncadd [#allocation9], 0
      %s54 = sshll.u32 %s3, 4
      %s55 = int_to_ptr.hbm [resolvable:$true] %s54
      %s56 = sshll.u32 [#allocation10], 4
      %s57 = int_to_ptr.vmem [resolvable:$true] %s56
      %62 = dma.hbm_to_vmem [thread:$0]  %s55, 512, %s57, [#allocation9], 128, 128, 8
    $region17: #{network_magenta_forward.1} parent=1 // pred_fallthru
      _
    // Predicated region
    $region18: #{network_magenta_forward.1} parent=1 // pred_check
      _
    $region19: #{network_magenta_forward.1} parent=1 // pred_check_branch
      %64 = sbr.rel (0) target = $region21
    $region20: #{network_magenta_forward.1} parent=1 // pred_region
      _
    $region21: #{network_magenta_forward.1} parent=1 // pred_fallthru
      _
    // Predicated region
    $region22: #{network_magenta_forward.1} parent=1 // pred_check
      _
    $region23: #{network_magenta_forward.1} parent=1 // pred_check_branch
      %66 = sbr.rel (0) target = $region25
    $region24: #{network_magenta_forward.1} parent=1 // pred_region
      _
    $region25: #{network_magenta_forward.1} parent=1 // pred_fallthru
      _
    // Predicated region
    $region26: #{network_magenta_forward.1} parent=1 // pred_check
      _
    $region27: #{network_magenta_forward.1} parent=1 // pred_check_branch
      %68 = sbr.rel (0) target = $region29
    $region28: #{network_magenta_forward.1} parent=1 // pred_region
      _
    $region29: #{network_magenta_forward.1} parent=1 // pred_fallthru
      _
    // Predicated region
    $region30: #{network_magenta_forward.1} parent=1 // pred_check
      _
    $region31: #{network_magenta_forward.1} parent=1 // pred_check_branch
      %70 = sbr.rel (0) target = $region33
    $region32: #{network_magenta_forward.1} parent=1 // pred_region
      _
    $region33: #{network_magenta_forward.1} parent=1 // pred_fallthru
      _
    // Predicated region
    $region34: #{network_magenta_forward.1} parent=1 // pred_check
      _
    $region35: #{network_magenta_forward.1} parent=1 // pred_check_branch
      %72 = sbr.rel (0) target = $region37
    $region36: #{network_magenta_forward.1} parent=1 // pred_region
      %74 = dma.done [#allocation6], 1024
    $region37: #{network_magenta_forward.1} parent=1 // pred_fallthru
      _
    // Predicated region
    $region38: #{network_magenta_forward.1} parent=1 // pred_check
      _
    $region39: #{network_magenta_forward.1} parent=1 // pred_check_branch
      %76 = sbr.rel (0) target = $region41
    $region40: #{network_magenta_forward.1} parent=1 // pred_region
      %78 = dma.done [#allocation9], 6272
    $region41: #{network_magenta_forward.1} parent=1 // pred_fallthru
      _
    // Predicated region
    $region42: #{network_magenta_forward.1} parent=1 // pred_check
      _
    $region43: #{network_magenta_forward.1} parent=1 // pred_check_branch
      %80 = sbr.rel (0) target = $region45
    $region44: #{network_magenta_forward.1} parent=1 // pred_region
      %82 = dma.done [#allocation9], 512
    $region45: #{network_magenta_forward.1} parent=1 // pred_fallthru
      _
    %v83 = vld [vmem:[#allocation8] sm:$0xff]
    %v84 = vld [vmem:[#allocation8 + $0x8] sm:$0xff]
    %v85 = vld [vmem:[#allocation8 + $0x10] sm:$0xff]
    %v86 = vld [vmem:[#allocation8 + $0x18] sm:$0xff]
    %v87 = vld [vmem:[#allocation8 + $0x20] sm:$0xff]
    %v88 = vld [vmem:[#allocation8 + $0x28] sm:$0xff]
    %v89 = vld [vmem:[#allocation8 + $0x30] sm:$0xff]
    %v90 = vld [vmem:[#allocation8 + $0x38] sm:$0xff]
    %v91 = vld [vmem:[#allocation8 + $0x40] sm:$0xff]
    %v92 = vld [vmem:[#allocation8 + $0x48] sm:$0xff]
    %v93 = vld [vmem:[#allocation8 + $0x50] sm:$0xff]
    %v94 = vld [vmem:[#allocation8 + $0x58] sm:$0xff]
    %v95 = vld [vmem:[#allocation8 + $0x60] sm:$0xff]
    %v96 = vld [vmem:[#allocation8 + $0x68] sm:$0xff]
    %v97 = vld [vmem:[#allocation8 + $0x70] sm:$0xff]
    %v98 = vld [vmem:[#allocation8 + $0x78] sm:$0xff]
    %v99 = vld [vmem:[#allocation8 + $0x80] sm:$0xff]
    %v100 = vld [vmem:[#allocation8 + $0x88] sm:$0xff]
    %v101 = vld [vmem:[#allocation8 + $0x90] sm:$0xff]
    %v102 = vld [vmem:[#allocation8 + $0x98] sm:$0xff]
    %v103 = vld [vmem:[#allocation8 + $0xa0] sm:$0xff]
    %v104 = vld [vmem:[#allocation8 + $0xa8] sm:$0xff]
    %v105 = vld [vmem:[#allocation8 + $0xb0] sm:$0xff]
    %v106 = vld [vmem:[#allocation8 + $0xb8] sm:$0xff]
    %v107 = vld [vmem:[#allocation8 + $0xc0] sm:$0xff]
    %v108 = vld [vmem:[#allocation8 + $0xc8] sm:$0xff]
    %v109 = vld [vmem:[#allocation8 + $0xd0] sm:$0xff]
    %v110 = vld [vmem:[#allocation8 + $0xd8] sm:$0xff]
    %v111 = vld [vmem:[#allocation8 + $0xe0] sm:$0xff]
    %v112 = vld [vmem:[#allocation8 + $0xe8] sm:$0xff]
    %v113 = vld [vmem:[#allocation8 + $0xf0] sm:$0xff]
    %v114 = vld [vmem:[#allocation8 + $0xf8] sm:$0xff]
    %v115 = vld [vmem:[#allocation8 + $0x100] sm:$0xff]
    %v116 = vld [vmem:[#allocation8 + $0x108] sm:$0xff]
    %v117 = vld [vmem:[#allocation8 + $0x110] sm:$0xff]
    %v118 = vld [vmem:[#allocation8 + $0x118] sm:$0xff]
    %v119 = vld [vmem:[#allocation8 + $0x120] sm:$0xff]
    %v120 = vld [vmem:[#allocation8 + $0x128] sm:$0xff]
    %v121 = vld [vmem:[#allocation8 + $0x130] sm:$0xff]
    %v122 = vld [vmem:[#allocation8 + $0x138] sm:$0xff]
    %v123 = vld [vmem:[#allocation8 + $0x140] sm:$0xff]
    %v124 = vld [vmem:[#allocation8 + $0x148] sm:$0xff]
    %v125 = vld [vmem:[#allocation8 + $0x150] sm:$0xff]
    %v126 = vld [vmem:[#allocation8 + $0x158] sm:$0xff]
    %v127 = vld [vmem:[#allocation8 + $0x160] sm:$0xff]
    %v128 = vld [vmem:[#allocation8 + $0x168] sm:$0xff]
    %v129 = vld [vmem:[#allocation8 + $0x170] sm:$0xff]
    %v130 = vld [vmem:[#allocation8 + $0x178] sm:$0xff]
    %v131 = vld [vmem:[#allocation8 + $0x180] sm:$0xf]
    %v132 = vld [vmem:[%s2] sm:$0x1]
    %v133 = vld [vmem:[#allocation5] sm:$0xff]
    %v134 = vld [vmem:[#allocation5 + $0x8] sm:$0xff]
    %v135 = vld [vmem:[#allocation5 + $0x10] sm:$0xff]
    %v136 = vld [vmem:[#allocation5 + $0x18] sm:$0xff]
    %v138 = vperm.slane %v132, 0
    %vm140 = vcmask 31744
    %v142 = vsel %vm140, %v136, 0
    %vm144 = vcmask 1043456
    %v146 = vsel %vm144, %v131, 0
    %148 = vmatpush.msra.mxu0 %v98
    %149 = vmatpush.msra.mxu0 %v97
    %150 = vmatpush.msra.mxu0 %v96
    %151 = vmatpush.msra.mxu0 %v95
    %152 = vmatpush.msra.mxu0 %v94
    %153 = vmatpush.msra.mxu0 %v93
    %154 = vmatpush.msra.mxu0 %v92
    %155 = vmatpush.msra.mxu0 %v91
    %156 = vmatpush.msra.mxu0 %v90
    %157 = vmatpush.msra.mxu0 %v89
    %158 = vmatpush.msra.mxu0 %v88
    %159 = vmatpush.msra.mxu0 %v87
    %160 = vmatpush.msra.mxu0 %v86
    %161 = vmatpush.msra.mxu0 %v85
    %162 = vmatpush.msra.mxu0 %v84
    %163 = vmatpush.msra.mxu0 %v83
    %164 = vmatmul.f32.gmra.mxu0 %v133
    %v165 = vpop.f32.mrf.mxu0
    %v166 = vadd.f32 %v138, %v165
    %167 = vdwg.mxu0
    %168 = vmatpush.msra.mxu0 %v114
    %169 = vmatpush.msra.mxu0 %v113
    %170 = vmatpush.msra.mxu0 %v112
    %171 = vmatpush.msra.mxu0 %v111
    %172 = vmatpush.msra.mxu0 %v110
    %173 = vmatpush.msra.mxu0 %v109
    %174 = vmatpush.msra.mxu0 %v108
    %175 = vmatpush.msra.mxu0 %v107
    %176 = vmatpush.msra.mxu0 %v106
    %177 = vmatpush.msra.mxu0 %v105
    %178 = vmatpush.msra.mxu0 %v104
    %179 = vmatpush.msra.mxu0 %v103
    %180 = vmatpush.msra.mxu0 %v102
    %181 = vmatpush.msra.mxu0 %v101
    %182 = vmatpush.msra.mxu0 %v100
    %183 = vmatpush.msra.mxu0 %v99
    %184 = vmatmul.f32.gmra.mxu0 %v134
    %v185 = vpop.f32.mrf.mxu0
    %v186 = vadd.f32 %v166, %v185
    %187 = vdwg.mxu0
    %188 = vmatpush.msra.mxu0 %v130
    %189 = vmatpush.msra.mxu0 %v129
    %190 = vmatpush.msra.mxu0 %v128
    %191 = vmatpush.msra.mxu0 %v127
    %192 = vmatpush.msra.mxu0 %v126
    %193 = vmatpush.msra.mxu0 %v125
    %194 = vmatpush.msra.mxu0 %v124
    %195 = vmatpush.msra.mxu0 %v123
    %196 = vmatpush.msra.mxu0 %v122
    %197 = vmatpush.msra.mxu0 %v121
    %198 = vmatpush.msra.mxu0 %v120
    %199 = vmatpush.msra.mxu0 %v119
    %200 = vmatpush.msra.mxu0 %v118
    %201 = vmatpush.msra.mxu0 %v117
    %202 = vmatpush.msra.mxu0 %v116
    %203 = vmatpush.msra.mxu0 %v115
    %204 = vmatmul.f32.gmra.mxu0 %v135
    %v205 = vpop.f32.mrf.mxu0
    %v206 = vadd.f32 %v186, %v205
    %207 = vdwg.mxu0
    %208 = vmatpush.msra.mxu0 0.0
    %209 = vmatpush.msra.mxu0 0.0
    %210 = vmatpush.msra.mxu0 0.0
    %211 = vmatpush.msra.mxu0 0.0
    %212 = vmatpush.msra.mxu0 0.0
    %213 = vmatpush.msra.mxu0 0.0
    %214 = vmatpush.msra.mxu0 0.0
    %215 = vmatpush.msra.mxu0 0.0
    %216 = vmatpush.msra.mxu0 0.0
    %217 = vmatpush.msra.mxu0 0.0
    %218 = vmatpush.msra.mxu0 0.0
    %219 = vmatpush.msra.mxu0 0.0
    %220 = vmatpush.msra.mxu0 0.0
    %221 = vmatpush.msra.mxu0 0.0
    %222 = vmatpush.msra.mxu0 0.0
    %223 = vmatpush.msra.mxu0 %v146
    %224 = vmatmul.f32.gmra.mxu0 %v142
    %v225 = vpop.f32.mrf.mxu0
    %v226 = vadd.f32 %v206, %v225
    %227 = vdwg.mxu0
    %v229 = vrot.slane %v226, 1
    %v230 = vrot.slane %v226, 2
    %v231 = vrot.slane %v226, 3
    %v232 = vrot.slane %v226, 4
    %v233 = vrot.slane %v226, 5
    %v234 = vrot.slane %v226, 6
    %v235 = vrot.slane %v226, 7
    %243 = vst [vmem:[#allocation2] sm:$0x1] %v226
    %244 = vst [vmem:[#allocation2 + $0x2] sm:$0x1] %v229
    %245 = vst [vmem:[#allocation2 + $0x4] sm:$0x1] %v230
    %246 = vst [vmem:[#allocation2 + $0x6] sm:$0x1] %v231
    %247 = vst [vmem:[#allocation2 + $0x8] sm:$0x1] %v232
    %248 = vst [vmem:[#allocation2 + $0xa] sm:$0x1] %v233
    %249 = vst [vmem:[#allocation2 + $0xc] sm:$0x1] %v234
    %250 = vst [vmem:[#allocation2 + $0xe] sm:$0x1] %v235
    %s251 = scalar_lea.vmem [#allocation5], 32
    %v252 = vld [vmem:[%s251] sm:$0xff]
    %v253 = vld [vmem:[%s251 + $0x8] sm:$0xff]
    %v254 = vld [vmem:[%s251 + $0x10] sm:$0xff]
    %v255 = vld [vmem:[%s251 + $0x18] sm:$0xff]
    %v257 = vsel %vm140, %v255, 0
    %259 = vmatpush.msra.mxu0 %v98
    %260 = vmatpush.msra.mxu0 %v97
    %261 = vmatpush.msra.mxu0 %v96
    %262 = vmatpush.msra.mxu0 %v95
    %263 = vmatpush.msra.mxu0 %v94
    %264 = vmatpush.msra.mxu0 %v93
    %265 = vmatpush.msra.mxu0 %v92
    %266 = vmatpush.msra.mxu0 %v91
    %267 = vmatpush.msra.mxu0 %v90
    %268 = vmatpush.msra.mxu0 %v89
    %269 = vmatpush.msra.mxu0 %v88
    %270 = vmatpush.msra.mxu0 %v87
    %271 = vmatpush.msra.mxu0 %v86
    %272 = vmatpush.msra.mxu0 %v85
    %273 = vmatpush.msra.mxu0 %v84
    %274 = vmatpush.msra.mxu0 %v83
    %275 = vmatmul.f32.gmra.mxu0 %v252
    %v276 = vpop.f32.mrf.mxu0
    %v277 = vadd.f32 %v138, %v276
    %278 = vdwg.mxu0
    %279 = vmatpush.msra.mxu0 %v114
    %280 = vmatpush.msra.mxu0 %v113
    %281 = vmatpush.msra.mxu0 %v112
    %282 = vmatpush.msra.mxu0 %v111
    %283 = vmatpush.msra.mxu0 %v110
    %284 = vmatpush.msra.mxu0 %v109
    %285 = vmatpush.msra.mxu0 %v108
    %286 = vmatpush.msra.mxu0 %v107
    %287 = vmatpush.msra.mxu0 %v106
    %288 = vmatpush.msra.mxu0 %v105
    %289 = vmatpush.msra.mxu0 %v104
    %290 = vmatpush.msra.mxu0 %v103
    %291 = vmatpush.msra.mxu0 %v102
    %292 = vmatpush.msra.mxu0 %v101
    %293 = vmatpush.msra.mxu0 %v100
    %294 = vmatpush.msra.mxu0 %v99
    %295 = vmatmul.f32.gmra.mxu0 %v253
    %v296 = vpop.f32.mrf.mxu0
    %v297 = vadd.f32 %v277, %v296
    %298 = vdwg.mxu0
    %299 = vmatpush.msra.mxu0 %v130
    %300 = vmatpush.msra.mxu0 %v129
    %301 = vmatpush.msra.mxu0 %v128
    %302 = vmatpush.msra.mxu0 %v127
    %303 = vmatpush.msra.mxu0 %v126
    %304 = vmatpush.msra.mxu0 %v125
    %305 = vmatpush.msra.mxu0 %v124
    %306 = vmatpush.msra.mxu0 %v123
    %307 = vmatpush.msra.mxu0 %v122
    %308 = vmatpush.msra.mxu0 %v121
    %309 = vmatpush.msra.mxu0 %v120
    %310 = vmatpush.msra.mxu0 %v119
    %311 = vmatpush.msra.mxu0 %v118
    %312 = vmatpush.msra.mxu0 %v117
    %313 = vmatpush.msra.mxu0 %v116
    %314 = vmatpush.msra.mxu0 %v115
    %315 = vmatmul.f32.gmra.mxu0 %v254
    %v316 = vpop.f32.mrf.mxu0
    %v317 = vadd.f32 %v297, %v316
    %318 = vdwg.mxu0
    %319 = vmatpush.msra.mxu0 0.0
    %320 = vmatpush.msra.mxu0 0.0
    %321 = vmatpush.msra.mxu0 0.0
    %322 = vmatpush.msra.mxu0 0.0
    %323 = vmatpush.msra.mxu0 0.0
    %324 = vmatpush.msra.mxu0 0.0
    %325 = vmatpush.msra.mxu0 0.0
    %326 = vmatpush.msra.mxu0 0.0
    %327 = vmatpush.msra.mxu0 0.0
    %328 = vmatpush.msra.mxu0 0.0
    %329 = vmatpush.msra.mxu0 0.0
    %330 = vmatpush.msra.mxu0 0.0
    %331 = vmatpush.msra.mxu0 0.0
    %332 = vmatpush.msra.mxu0 0.0
    %333 = vmatpush.msra.mxu0 0.0
    %334 = vmatpush.msra.mxu0 %v146
    %335 = vmatmul.f32.gmra.mxu0 %v257
    %v336 = vpop.f32.mrf.mxu0
    %v337 = vadd.f32 %v317, %v336
    %338 = vdwg.mxu0
    %v340 = vrot.slane %v337, 1
    %v341 = vrot.slane %v337, 2
    %v342 = vrot.slane %v337, 3
    %v343 = vrot.slane %v337, 4
    %v344 = vrot.slane %v337, 5
    %v345 = vrot.slane %v337, 6
    %v346 = vrot.slane %v337, 7
    %354 = vst [vmem:[#allocation2 + $0x1] sm:$0x1] %v337
    %355 = vst [vmem:[#allocation2 + $0x3] sm:$0x1] %v340
    %356 = vst [vmem:[#allocation2 + $0x5] sm:$0x1] %v341
    %357 = vst [vmem:[#allocation2 + $0x7] sm:$0x1] %v342
    %358 = vst [vmem:[#allocation2 + $0x9] sm:$0x1] %v343
    %359 = vst [vmem:[#allocation2 + $0xb] sm:$0x1] %v344
    %360 = vst [vmem:[#allocation2 + $0xd] sm:$0x1] %v345
    %361 = vst [vmem:[#allocation2 + $0xf] sm:$0x1] %v346
    %v362 = vld [vmem:[#allocation10] sm:$0xff]
    %v363 = vld [vmem:[#allocation10 + $0x8] sm:$0xff]
    %v364 = vld [vmem:[#allocation10 + $0x10] sm:$0xff]
    %v365 = vld [vmem:[#allocation10 + $0x18] sm:$0xff]
    %v366 = vld [vmem:[%s4] sm:$0x3]
    %v367 = vld [vmem:[%s5] sm:$0x3]
    %v368 = vld [vmem:[#allocation2] sm:$0x3]
    %vm369 = vcmask 261120
    %v371 = vsel %vm369, %v366, 0
    %373 = vmatpush.msra.mxu0 0.0
    %374 = vmatpush.msra.mxu0 0.0
    %375 = vmatpush.msra.mxu0 0.0
    %376 = vmatpush.msra.mxu0 0.0
    %377 = vmatpush.msra.mxu0 0.0
    %378 = vmatpush.msra.mxu0 0.0
    %379 = vmatpush.msra.mxu0 0.0
    %380 = vmatpush.msra.mxu0 0.0
    %381 = vmatpush.msra.mxu0 0.0
    %382 = vmatpush.msra.mxu0 0.0
    %383 = vmatpush.msra.mxu0 0.0
    %384 = vmatpush.msra.mxu0 0.0
    %385 = vmatpush.msra.mxu0 %v365
    %386 = vmatpush.msra.mxu0 %v364
    %387 = vmatpush.msra.mxu0 %v363
    %388 = vmatpush.msra.mxu0 %v362
    %389 = vmatmul.f32.gmra.mxu0 %v371
    %v390 = vpop.f32.mrf.mxu0
    %v391 = vadd.f32 0.0, %v390
    %392 = vdwg.mxu0
    %v393 = vadd.f32 %v368, %v391
    %v394 = vxor.u32 %v393, 2147483648
    %v395 = vmul.f32 %v394, 1.442695
    %v396 = vpow.pop %v395
    %v397 = vadd.f32 %v396, 1.0
    %v398 = vrcp.pop %v397
    %v399 = vmul.f32 %v397, %v398
    %v400 = vsub.f32 1.0, %v399
    %v401 = vmul.f32 %v398, %v400
    %v402 = vadd.f32 %v398, %v401
    %vm403 = vweird.f32 %v397
    %vm404 = vweird.f32 %v398
    %vm405 = vmor %vm403, %vm404
    %v406 = vsel %vm405, %v398, %v402
    %v407 = vand.u32 2147483647, %v397
    %vm408 = vcmp.eq.f32.partialorder %v407, 8.507059e+37
    %v409 = vand.u32 %v397, 2147483648
    %v410 = vor.u32 1.1754944e-38, %v409
    %v411 = vsel %vm408, %v410, %v406
    %v412 = vmul.f32 1.0, %v411
    %v413 = vtanh.pop %v393
    %415 = vrot.lane.b32.xlu0 %v367, 32
    %v416 = vpop.permute.xlu0 %415
    %v418 = vmul.f32 %v412, %v416
    %420 = vrot.lane.b32.xlu0 %v413, 64
    %v421 = vpop.permute.xlu0 %420
    %v423 = vmul.f32 %v412, %v421
    %425 = vrot.lane.b32.xlu0 %v423, 32
    %v426 = vpop.permute.xlu0 %425
    %v428 = vadd.f32 %v418, %v426
    %v429 = vtanh.pop %v428
    %431 = vrot.lane.b32.xlu0 %v429, 64
    %v432 = vpop.permute.xlu0 %431
    %v434 = vmul.f32 %v412, %v432
    %436 = vrot.lane.b32.xlu0 %v434, 32
    %v437 = vpop.permute.xlu0 %436
    %vm439 = vcmask 254976
    %440 = vst.msk [vmem:[#allocation3] sm:$0x3] %vm439, %v437
    %s441 = scalar_lea.vmem [#allocation2], 2
    %v442 = vld [vmem:[%s441] sm:$0x3]
    %v443 = vsel %vm369, %v437, 0
    %445 = vmatpush.msra.mxu0 0.0
    %446 = vmatpush.msra.mxu0 0.0
    %447 = vmatpush.msra.mxu0 0.0
    %448 = vmatpush.msra.mxu0 0.0
    %449 = vmatpush.msra.mxu0 0.0
    %450 = vmatpush.msra.mxu0 0.0
    %451 = vmatpush.msra.mxu0 0.0
    %452 = vmatpush.msra.mxu0 0.0
    %453 = vmatpush.msra.mxu0 0.0
    %454 = vmatpush.msra.mxu0 0.0
    %455 = vmatpush.msra.mxu0 0.0
    %456 = vmatpush.msra.mxu0 0.0
    %457 = vmatpush.msra.mxu0 %v365
    %458 = vmatpush.msra.mxu0 %v364
    %459 = vmatpush.msra.mxu0 %v363
    %460 = vmatpush.msra.mxu0 %v362
    %461 = vmatmul.f32.gmra.mxu0 %v443
    %v462 = vpop.f32.mrf.mxu0
    %v463 = vadd.f32 0.0, %v462
    %464 = vdwg.mxu0
    %v465 = vadd.f32 %v442, %v463
    %v466 = vxor.u32 %v465, 2147483648
    %v467 = vmul.f32 %v466, 1.442695
    %v468 = vpow.pop %v467
    %v469 = vadd.f32 %v468, 1.0
    %v470 = vrcp.pop %v469
    %v471 = vmul.f32 %v469, %v470
    %v472 = vsub.f32 1.0, %v471
    %v473 = vmul.f32 %v470, %v472
    %v474 = vadd.f32 %v470, %v473
    %vm475 = vweird.f32 %v469
    %vm476 = vweird.f32 %v470
    %vm477 = vmor %vm475, %vm476
    %v478 = vsel %vm477, %v470, %v474
    %v479 = vand.u32 2147483647, %v469
    %vm480 = vcmp.eq.f32.partialorder %v479, 8.507059e+37
    %v481 = vand.u32 %v469, 2147483648
    %v482 = vor.u32 1.1754944e-38, %v481
    %v483 = vsel %vm480, %v482, %v478
    %v484 = vmul.f32 1.0, %v483
    %v485 = vtanh.pop %v465
    %v486 = vmul.f32 %v484, %v428
    %488 = vrot.lane.b32.xlu0 %v485, 64
    %v489 = vpop.permute.xlu0 %488
    %v491 = vmul.f32 %v484, %v489
    %493 = vrot.lane.b32.xlu0 %v491, 32
    %v494 = vpop.permute.xlu0 %493
    %v496 = vadd.f32 %v486, %v494
    %v497 = vtanh.pop %v496
    %499 = vrot.lane.b32.xlu0 %v497, 64
    %v500 = vpop.permute.xlu0 %499
    %v502 = vmul.f32 %v484, %v500
    %504 = vrot.lane.b32.xlu0 %v502, 32
    %v505 = vpop.permute.xlu0 %504
    %s507 = scalar_lea.vmem [#allocation3], 2
    %508 = vst.msk [vmem:[%s507] sm:$0x3] %vm439, %v505
    %s509 = scalar_lea.vmem [#allocation2], 4
    %v510 = vld [vmem:[%s509] sm:$0x3]
    %v511 = vsel %vm369, %v505, 0
    %513 = vmatpush.msra.mxu0 0.0
    %514 = vmatpush.msra.mxu0 0.0
    %515 = vmatpush.msra.mxu0 0.0
    %516 = vmatpush.msra.mxu0 0.0
    %517 = vmatpush.msra.mxu0 0.0
    %518 = vmatpush.msra.mxu0 0.0
    %519 = vmatpush.msra.mxu0 0.0
    %520 = vmatpush.msra.mxu0 0.0
    %521 = vmatpush.msra.mxu0 0.0
    %522 = vmatpush.msra.mxu0 0.0
    %523 = vmatpush.msra.mxu0 0.0
    %524 = vmatpush.msra.mxu0 0.0
    %525 = vmatpush.msra.mxu0 %v365
    %526 = vmatpush.msra.mxu0 %v364
    %527 = vmatpush.msra.mxu0 %v363
    %528 = vmatpush.msra.mxu0 %v362
    %529 = vmatmul.f32.gmra.mxu0 %v511
    %v530 = vpop.f32.mrf.mxu0
    %v531 = vadd.f32 0.0, %v530
    %532 = vdwg.mxu0
    %v533 = vadd.f32 %v510, %v531
    %v534 = vxor.u32 %v533, 2147483648
    %v535 = vmul.f32 %v534, 1.442695
    %v536 = vpow.pop %v535
    %v537 = vadd.f32 %v536, 1.0
    %v538 = vrcp.pop %v537
    %v539 = vmul.f32 %v537, %v538
    %v540 = vsub.f32 1.0, %v539
    %v541 = vmul.f32 %v538, %v540
    %v542 = vadd.f32 %v538, %v541
    %vm543 = vweird.f32 %v537
    %vm544 = vweird.f32 %v538
    %vm545 = vmor %vm543, %vm544
    %v546 = vsel %vm545, %v538, %v542
    %v547 = vand.u32 2147483647, %v537
    %vm548 = vcmp.eq.f32.partialorder %v547, 8.507059e+37
    %v549 = vand.u32 %v537, 2147483648
    %v550 = vor.u32 1.1754944e-38, %v549
    %v551 = vsel %vm548, %v550, %v546
    %v552 = vmul.f32 1.0, %v551
    %v553 = vtanh.pop %v533
    %v554 = vmul.f32 %v552, %v496
    %556 = vrot.lane.b32.xlu0 %v553, 64
    %v557 = vpop.permute.xlu0 %556
    %v559 = vmul.f32 %v552, %v557
    %561 = vrot.lane.b32.xlu0 %v559, 32
    %v562 = vpop.permute.xlu0 %561
    %v564 = vadd.f32 %v554, %v562
    %v565 = vtanh.pop %v564
    %567 = vrot.lane.b32.xlu0 %v565, 64
    %v568 = vpop.permute.xlu0 %567
    %v570 = vmul.f32 %v552, %v568
    %572 = vrot.lane.b32.xlu0 %v570, 32
    %v573 = vpop.permute.xlu0 %572
    %s575 = scalar_lea.vmem [#allocation3], 4
    %576 = vst.msk [vmem:[%s575] sm:$0x3] %vm439, %v573
    %s577 = scalar_lea.vmem [#allocation2], 6
    %v578 = vld [vmem:[%s577] sm:$0x3]
    %v579 = vsel %vm369, %v573, 0
    %581 = vmatpush.msra.mxu0 0.0
    %582 = vmatpush.msra.mxu0 0.0
    %583 = vmatpush.msra.mxu0 0.0
    %584 = vmatpush.msra.mxu0 0.0
    %585 = vmatpush.msra.mxu0 0.0
    %586 = vmatpush.msra.mxu0 0.0
    %587 = vmatpush.msra.mxu0 0.0
    %588 = vmatpush.msra.mxu0 0.0
    %589 = vmatpush.msra.mxu0 0.0
    %590 = vmatpush.msra.mxu0 0.0
    %591 = vmatpush.msra.mxu0 0.0
    %592 = vmatpush.msra.mxu0 0.0
    %593 = vmatpush.msra.mxu0 %v365
    %594 = vmatpush.msra.mxu0 %v364
    %595 = vmatpush.msra.mxu0 %v363
    %596 = vmatpush.msra.mxu0 %v362
    %597 = vmatmul.f32.gmra.mxu0 %v579
    %v598 = vpop.f32.mrf.mxu0
    %v599 = vadd.f32 0.0, %v598
    %600 = vdwg.mxu0
    %v601 = vadd.f32 %v578, %v599
    %v602 = vxor.u32 %v601, 2147483648
    %v603 = vmul.f32 %v602, 1.442695
    %v604 = vpow.pop %v603
    %v605 = vadd.f32 %v604, 1.0
    %v606 = vrcp.pop %v605
    %v607 = vmul.f32 %v605, %v606
    %v608 = vsub.f32 1.0, %v607
    %v609 = vmul.f32 %v606, %v608
    %v610 = vadd.f32 %v606, %v609
    %vm611 = vweird.f32 %v605
    %vm612 = vweird.f32 %v606
    %vm613 = vmor %vm611, %vm612
    %v614 = vsel %vm613, %v606, %v610
    %v615 = vand.u32 2147483647, %v605
    %vm616 = vcmp.eq.f32.partialorder %v615, 8.507059e+37
    %v617 = vand.u32 %v605, 2147483648
    %v618 = vor.u32 1.1754944e-38, %v617
    %v619 = vsel %vm616, %v618, %v614
    %v620 = vmul.f32 1.0, %v619
    %v621 = vtanh.pop %v601
    %v622 = vmul.f32 %v620, %v564
    %624 = vrot.lane.b32.xlu0 %v621, 64
    %v625 = vpop.permute.xlu0 %624
    %v627 = vmul.f32 %v620, %v625
    %629 = vrot.lane.b32.xlu0 %v627, 32
    %v630 = vpop.permute.xlu0 %629
    %v632 = vadd.f32 %v622, %v630
    %v633 = vtanh.pop %v632
    %635 = vrot.lane.b32.xlu0 %v633, 64
    %v636 = vpop.permute.xlu0 %635
    %v638 = vmul.f32 %v620, %v636
    %640 = vrot.lane.b32.xlu0 %v638, 32
    %v641 = vpop.permute.xlu0 %640
    %s643 = scalar_lea.vmem [#allocation3], 6
    %644 = vst.msk [vmem:[%s643] sm:$0x3] %vm439, %v641
    %s645 = scalar_lea.vmem [#allocation2], 8
    %v646 = vld [vmem:[%s645] sm:$0x3]
    %v647 = vsel %vm369, %v641, 0
    %649 = vmatpush.msra.mxu0 0.0
    %650 = vmatpush.msra.mxu0 0.0
    %651 = vmatpush.msra.mxu0 0.0
    %652 = vmatpush.msra.mxu0 0.0
    %653 = vmatpush.msra.mxu0 0.0
    %654 = vmatpush.msra.mxu0 0.0
    %655 = vmatpush.msra.mxu0 0.0
    %656 = vmatpush.msra.mxu0 0.0
    %657 = vmatpush.msra.mxu0 0.0
    %658 = vmatpush.msra.mxu0 0.0
    %659 = vmatpush.msra.mxu0 0.0
    %660 = vmatpush.msra.mxu0 0.0
    %661 = vmatpush.msra.mxu0 %v365
    %662 = vmatpush.msra.mxu0 %v364
    %663 = vmatpush.msra.mxu0 %v363
    %664 = vmatpush.msra.mxu0 %v362
    %665 = vmatmul.f32.gmra.mxu0 %v647
    %v666 = vpop.f32.mrf.mxu0
    %v667 = vadd.f32 0.0, %v666
    %668 = vdwg.mxu0
    %v669 = vadd.f32 %v646, %v667
    %v670 = vxor.u32 %v669, 2147483648
    %v671 = vmul.f32 %v670, 1.442695
    %v672 = vpow.pop %v671
    %v673 = vadd.f32 %v672, 1.0
    %v674 = vrcp.pop %v673
    %v675 = vmul.f32 %v673, %v674
    %v676 = vsub.f32 1.0, %v675
    %v677 = vmul.f32 %v674, %v676
    %v678 = vadd.f32 %v674, %v677
    %vm679 = vweird.f32 %v673
    %vm680 = vweird.f32 %v674
    %vm681 = vmor %vm679, %vm680
    %v682 = vsel %vm681, %v674, %v678
    %v683 = vand.u32 2147483647, %v673
    %vm684 = vcmp.eq.f32.partialorder %v683, 8.507059e+37
    %v685 = vand.u32 %v673, 2147483648
    %v686 = vor.u32 1.1754944e-38, %v685
    %v687 = vsel %vm684, %v686, %v682
    %v688 = vmul.f32 1.0, %v687
    %v689 = vtanh.pop %v669
    %v690 = vmul.f32 %v688, %v632
    %692 = vrot.lane.b32.xlu0 %v689, 64
    %v693 = vpop.permute.xlu0 %692
    %v695 = vmul.f32 %v688, %v693
    %697 = vrot.lane.b32.xlu0 %v695, 32
    %v698 = vpop.permute.xlu0 %697
    %v700 = vadd.f32 %v690, %v698
    %v701 = vtanh.pop %v700
    %703 = vrot.lane.b32.xlu0 %v701, 64
    %v704 = vpop.permute.xlu0 %703
    %v706 = vmul.f32 %v688, %v704
    %708 = vrot.lane.b32.xlu0 %v706, 32
    %v709 = vpop.permute.xlu0 %708
    %s711 = scalar_lea.vmem [#allocation3], 8
    %712 = vst.msk [vmem:[%s711] sm:$0x3] %vm439, %v709
    %s713 = scalar_lea.vmem [#allocation2], 10
    %v714 = vld [vmem:[%s713] sm:$0x3]
    %v715 = vsel %vm369, %v709, 0
    %717 = vmatpush.msra.mxu0 0.0
    %718 = vmatpush.msra.mxu0 0.0
    %719 = vmatpush.msra.mxu0 0.0
    %720 = vmatpush.msra.mxu0 0.0
    %721 = vmatpush.msra.mxu0 0.0
    %722 = vmatpush.msra.mxu0 0.0
    %723 = vmatpush.msra.mxu0 0.0
    %724 = vmatpush.msra.mxu0 0.0
    %725 = vmatpush.msra.mxu0 0.0
    %726 = vmatpush.msra.mxu0 0.0
    %727 = vmatpush.msra.mxu0 0.0
    %728 = vmatpush.msra.mxu0 0.0
    %729 = vmatpush.msra.mxu0 %v365
    %730 = vmatpush.msra.mxu0 %v364
    %731 = vmatpush.msra.mxu0 %v363
    %732 = vmatpush.msra.mxu0 %v362
    %733 = vmatmul.f32.gmra.mxu0 %v715
    %v734 = vpop.f32.mrf.mxu0
    %v735 = vadd.f32 0.0, %v734
    %736 = vdwg.mxu0
    %v737 = vadd.f32 %v714, %v735
    %v738 = vxor.u32 %v737, 2147483648
    %v739 = vmul.f32 %v738, 1.442695
    %v740 = vpow.pop %v739
    %v741 = vadd.f32 %v740, 1.0
    %v742 = vrcp.pop %v741
    %v743 = vmul.f32 %v741, %v742
    %v744 = vsub.f32 1.0, %v743
    %v745 = vmul.f32 %v742, %v744
    %v746 = vadd.f32 %v742, %v745
    %vm747 = vweird.f32 %v741
    %vm748 = vweird.f32 %v742
    %vm749 = vmor %vm747, %vm748
    %v750 = vsel %vm749, %v742, %v746
    %v751 = vand.u32 2147483647, %v741
    %vm752 = vcmp.eq.f32.partialorder %v751, 8.507059e+37
    %v753 = vand.u32 %v741, 2147483648
    %v754 = vor.u32 1.1754944e-38, %v753
    %v755 = vsel %vm752, %v754, %v750
    %v756 = vmul.f32 1.0, %v755
    %v757 = vtanh.pop %v737
    %v758 = vmul.f32 %v756, %v700
    %760 = vrot.lane.b32.xlu0 %v757, 64
    %v761 = vpop.permute.xlu0 %760
    %v763 = vmul.f32 %v756, %v761
    %765 = vrot.lane.b32.xlu0 %v763, 32
    %v766 = vpop.permute.xlu0 %765
    %v768 = vadd.f32 %v758, %v766
    %v769 = vtanh.pop %v768
    %771 = vrot.lane.b32.xlu0 %v769, 64
    %v772 = vpop.permute.xlu0 %771
    %v774 = vmul.f32 %v756, %v772
    %776 = vrot.lane.b32.xlu0 %v774, 32
    %v777 = vpop.permute.xlu0 %776
    %s779 = scalar_lea.vmem [#allocation3], 10
    %780 = vst.msk [vmem:[%s779] sm:$0x3] %vm439, %v777
    %s781 = scalar_lea.vmem [#allocation2], 12
    %v782 = vld [vmem:[%s781] sm:$0x3]
    %v783 = vsel %vm369, %v777, 0
    %785 = vmatpush.msra.mxu0 0.0
    %786 = vmatpush.msra.mxu0 0.0
    %787 = vmatpush.msra.mxu0 0.0
    %788 = vmatpush.msra.mxu0 0.0
    %789 = vmatpush.msra.mxu0 0.0
    %790 = vmatpush.msra.mxu0 0.0
    %791 = vmatpush.msra.mxu0 0.0
    %792 = vmatpush.msra.mxu0 0.0
    %793 = vmatpush.msra.mxu0 0.0
    %794 = vmatpush.msra.mxu0 0.0
    %795 = vmatpush.msra.mxu0 0.0
    %796 = vmatpush.msra.mxu0 0.0
    %797 = vmatpush.msra.mxu0 %v365
    %798 = vmatpush.msra.mxu0 %v364
    %799 = vmatpush.msra.mxu0 %v363
    %800 = vmatpush.msra.mxu0 %v362
    %801 = vmatmul.f32.gmra.mxu0 %v783
    %v802 = vpop.f32.mrf.mxu0
    %v803 = vadd.f32 0.0, %v802
    %804 = vdwg.mxu0
    %v805 = vadd.f32 %v782, %v803
    %v806 = vxor.u32 %v805, 2147483648
    %v807 = vmul.f32 %v806, 1.442695
    %v808 = vpow.pop %v807
    %v809 = vadd.f32 %v808, 1.0
    %v810 = vrcp.pop %v809
    %v811 = vmul.f32 %v809, %v810
    %v812 = vsub.f32 1.0, %v811
    %v813 = vmul.f32 %v810, %v812
    %v814 = vadd.f32 %v810, %v813
    %vm815 = vweird.f32 %v809
    %vm816 = vweird.f32 %v810
    %vm817 = vmor %vm815, %vm816
    %v818 = vsel %vm817, %v810, %v814
    %v819 = vand.u32 2147483647, %v809
    %vm820 = vcmp.eq.f32.partialorder %v819, 8.507059e+37
    %v821 = vand.u32 %v809, 2147483648
    %v822 = vor.u32 1.1754944e-38, %v821
    %v823 = vsel %vm820, %v822, %v818
    %v824 = vmul.f32 1.0, %v823
    %v825 = vtanh.pop %v805
    %v826 = vmul.f32 %v824, %v768
    %828 = vrot.lane.b32.xlu0 %v825, 64
    %v829 = vpop.permute.xlu0 %828
    %v831 = vmul.f32 %v824, %v829
    %833 = vrot.lane.b32.xlu0 %v831, 32
    %v834 = vpop.permute.xlu0 %833
    %v836 = vadd.f32 %v826, %v834
    %v837 = vtanh.pop %v836
    %839 = vrot.lane.b32.xlu0 %v837, 64
    %v840 = vpop.permute.xlu0 %839
    %v842 = vmul.f32 %v824, %v840
    %844 = vrot.lane.b32.xlu0 %v842, 32
    %v845 = vpop.permute.xlu0 %844
    %s847 = scalar_lea.vmem [#allocation3], 12
    %848 = vst.msk [vmem:[%s847] sm:$0x3] %vm439, %v845
    %s849 = scalar_lea.vmem [#allocation2], 14
    %v850 = vld [vmem:[%s849] sm:$0x3]
    %v851 = vsel %vm369, %v845, 0
    %853 = vmatpush.msra.mxu0 0.0
    %854 = vmatpush.msra.mxu0 0.0
    %855 = vmatpush.msra.mxu0 0.0
    %856 = vmatpush.msra.mxu0 0.0
    %857 = vmatpush.msra.mxu0 0.0
    %858 = vmatpush.msra.mxu0 0.0
    %859 = vmatpush.msra.mxu0 0.0
    %860 = vmatpush.msra.mxu0 0.0
    %861 = vmatpush.msra.mxu0 0.0
    %862 = vmatpush.msra.mxu0 0.0
    %863 = vmatpush.msra.mxu0 0.0
    %864 = vmatpush.msra.mxu0 0.0
    %865 = vmatpush.msra.mxu0 %v365
    %866 = vmatpush.msra.mxu0 %v364
    %867 = vmatpush.msra.mxu0 %v363
    %868 = vmatpush.msra.mxu0 %v362
    %869 = vmatmul.f32.gmra.mxu0 %v851
    %v870 = vpop.f32.mrf.mxu0
    %v871 = vadd.f32 0.0, %v870
    %872 = vdwg.mxu0
    %v873 = vadd.f32 %v850, %v871
    %v874 = vxor.u32 %v873, 2147483648
    %v875 = vmul.f32 %v874, 1.442695
    %v876 = vpow.pop %v875
    %v877 = vadd.f32 %v876, 1.0
    %v878 = vrcp.pop %v877
    %v879 = vmul.f32 %v877, %v878
    %v880 = vsub.f32 1.0, %v879
    %v881 = vmul.f32 %v878, %v880
    %v882 = vadd.f32 %v878, %v881
    %vm883 = vweird.f32 %v877
    %vm884 = vweird.f32 %v878
    %vm885 = vmor %vm883, %vm884
    %v886 = vsel %vm885, %v878, %v882
    %v887 = vand.u32 2147483647, %v877
    %vm888 = vcmp.eq.f32.partialorder %v887, 8.507059e+37
    %v889 = vand.u32 %v877, 2147483648
    %v890 = vor.u32 1.1754944e-38, %v889
    %v891 = vsel %vm888, %v890, %v886
    %v892 = vmul.f32 1.0, %v891
    %v893 = vtanh.pop %v873
    %v894 = vmul.f32 %v892, %v836
    %896 = vrot.lane.b32.xlu0 %v893, 64
    %v897 = vpop.permute.xlu0 %896
    %v899 = vmul.f32 %v892, %v897
    %901 = vrot.lane.b32.xlu0 %v899, 32
    %v902 = vpop.permute.xlu0 %901
    %v904 = vadd.f32 %v894, %v902
    %v905 = vtanh.pop %v904
    %907 = vrot.lane.b32.xlu0 %v905, 64
    %v908 = vpop.permute.xlu0 %907
    %v910 = vmul.f32 %v892, %v908
    %912 = vrot.lane.b32.xlu0 %v910, 32
    %v913 = vpop.permute.xlu0 %912
    %s915 = scalar_lea.vmem [#allocation3], 14
    %916 = vst.msk [vmem:[%s915] sm:$0x3] %vm439, %v913
    %917 = vst.msk [vmem:[#allocation11] sm:$0x3] %vm439, %v913
    %919 = vrot.lane.b32.xlu0 %v904, 96
    %v920 = vpop.permute.xlu0 %919
    %922 = vst.msk [vmem:[#allocation12] sm:$0x3] %vm439, %v920
    %v923 = vld [vmem:[#allocation3] sm:$0x3]
    %v924 = vld [vmem:[#allocation3 + $0x2] sm:$0x3]
    %v925 = vld [vmem:[#allocation3 + $0x4] sm:$0x3]
    %v926 = vld [vmem:[#allocation3 + $0x6] sm:$0x3]
    %v927 = vld [vmem:[#allocation3 + $0x8] sm:$0x3]
    %v928 = vld [vmem:[#allocation3 + $0xa] sm:$0x3]
    %v929 = vld [vmem:[#allocation3 + $0xc] sm:$0x3]
    %v930 = vld [vmem:[#allocation3 + $0xe] sm:$0x3]
    %v931 = vld [vmem:[%s6] sm:$0x1]
    %v933 = vperm.slane %v931, 0
    %v935 = vmul.f32 %v923, %v933
    %v936 = vmul.f32 %v924, %v933
    %v937 = vmul.f32 %v925, %v933
    %v938 = vmul.f32 %v926, %v933
    %v939 = vmul.f32 %v927, %v933
    %v940 = vmul.f32 %v928, %v933
    %v941 = vmul.f32 %v929, %v933
    %v942 = vmul.f32 %v930, %v933
    %v943 = vsel %vm439, %v935, 0.0
    %944 = vadd.xlane.f32.xlu0 %v943
    %v945 = vpop.xlane.xlu0 %944
    %v946 = vsel %vm439, %v936, 0.0
    %947 = vadd.xlane.f32.xlu0 %v946
    %v948 = vpop.xlane.xlu0 %947
    %v949 = vsel %vm439, %v937, 0.0
    %950 = vadd.xlane.f32.xlu0 %v949
    %v951 = vpop.xlane.xlu0 %950
    %v952 = vsel %vm439, %v938, 0.0
    %953 = vadd.xlane.f32.xlu0 %v952
    %v954 = vpop.xlane.xlu0 %953
    %v955 = vsel %vm439, %v939, 0.0
    %956 = vadd.xlane.f32.xlu0 %v955
    %v957 = vpop.xlane.xlu0 %956
    %v958 = vsel %vm439, %v940, 0.0
    %959 = vadd.xlane.f32.xlu0 %v958
    %v960 = vpop.xlane.xlu0 %959
    %v961 = vsel %vm439, %v941, 0.0
    %962 = vadd.xlane.f32.xlu0 %v961
    %v963 = vpop.xlane.xlu0 %962
    %v964 = vsel %vm439, %v942, 0.0
    %965 = vadd.xlane.f32.xlu0 %v964
    %v966 = vpop.xlane.xlu0 %965
    %v967 = vld [vmem:[#allocation4] sm:$0x1]
    %v969 = vperm.slane %v967, 0
    %970 = vset.pattern.permute.xlu0 0
    %971 = vperm.xlu0 %970, %v969
    %v972 = vpop.permute.xlu0 %971
    %v974 = vadd.f32 %v945, %v972
    %v975 = vadd.f32 %v948, %v972
    %v976 = vadd.f32 %v951, %v972
    %v977 = vadd.f32 %v954, %v972
    %v978 = vadd.f32 %v957, %v972
    %v979 = vadd.f32 %v960, %v972
    %v980 = vadd.f32 %v963, %v972
    %v981 = vadd.f32 %v966, %v972
    %v990 = vlaneseq
    %v991 = vand.u32 %v990, 127
    %v992 = vperm.slane %v974, %v991
    %v993 = vperm.slane %v975, %v991
    %v994 = vperm.slane %v976, %v991
    %v995 = vperm.slane %v977, %v991
    %v996 = vperm.slane %v978, %v991
    %v997 = vperm.slane %v979, %v991
    %v998 = vperm.slane %v980, %v991
    %v999 = vperm.slane %v981, %v991
    %vm1000 = vcmask 1041409
    %v1001 = vsel %vm1000, %v993, %v992
    %vm1002 = vcmask 1042434
    %v1003 = vsel %vm1002, %v994, %v1001
    %vm1004 = vcmask 1043459
    %v1005 = vsel %vm1004, %v995, %v1003
    %vm1006 = vcmask 1044484
    %v1007 = vsel %vm1006, %v996, %v1005
    %vm1008 = vcmask 1045509
    %v1009 = vsel %vm1008, %v997, %v1007
    %vm1010 = vcmask 1046534
    %v1011 = vsel %vm1010, %v998, %v1009
    %vm1012 = vcmask 1047559
    %v1013 = vsel %vm1012, %v999, %v1011
    %vm1015 = vcmask 15360
    %1016 = vst.msk [vmem:[%s8] sm:$0xff] %vm1015, %v1013
    // Predicated region
    $region46: #{network_magenta_forward.1} parent=1 // pred_check
      _
    $region47: #{network_magenta_forward.1} parent=1 // pred_check_branch
      %1018 = sbr.rel (0) target = $region49
    $region48: #{network_magenta_forward.1} parent=1 // pred_region
      _
    $region49: #{network_magenta_forward.1} parent=1 // pred_fallthru
      _
    // Predicated region
    $region50: #{network_magenta_forward.1} parent=1 // pred_check
      _
    $region51: #{network_magenta_forward.1} parent=1 // pred_check_branch
      %1020 = sbr.rel (0) target = $region53
    $region52: #{network_magenta_forward.1} parent=1 // pred_region
      %1022 = vsyncadd [#allocation7], 0
      %s1024 = sshll.u32 [#allocation11], 4
      %s1025 = int_to_ptr.vmem [resolvable:$true] %s1024
      %s1026 = sshll.u32 %s9, 4
      %s1027 = int_to_ptr.hbm [resolvable:$true] %s1026
      %1029 = dma.vmem_to_hbm [thread:$0]  %s1025, 32, %s1027, [#allocation7]
    $region53: #{network_magenta_forward.1} parent=1 // pred_fallthru
      _
    // Predicated region
    $region54: #{network_magenta_forward.1} parent=1 // pred_check
      _
    $region55: #{network_magenta_forward.1} parent=1 // pred_check_branch
      %1031 = sbr.rel (0) target = $region57
    $region56: #{network_magenta_forward.1} parent=1 // pred_region
      %1033 = vsyncadd [#allocation13], 0
      %s1035 = sshll.u32 [#allocation12], 4
      %s1036 = int_to_ptr.vmem [resolvable:$true] %s1035
      %s1037 = sshll.u32 %s10, 4
      %s1038 = int_to_ptr.hbm [resolvable:$true] %s1037
      %1040 = dma.vmem_to_hbm [thread:$0]  %s1036, 32, %s1038, [#allocation13]
    $region57: #{network_magenta_forward.1} parent=1 // pred_fallthru
      _
    // Predicated region
    $region58: #{network_magenta_forward.1} parent=1 // pred_check
      _
    $region59: #{network_magenta_forward.1} parent=1 // pred_check_branch
      %1042 = sbr.rel (0) target = $region61
    $region60: #{network_magenta_forward.1} parent=1 // pred_region
      _
    $region61: #{network_magenta_forward.1} parent=1 // pred_fallthru
      _
    // Predicated region
    $region62: #{network_magenta_forward.1} parent=1 // pred_check
      _
    $region63: #{network_magenta_forward.1} parent=1 // pred_check_branch
      %1044 = sbr.rel (0) target = $region65
    $region64: #{network_magenta_forward.1} parent=1 // pred_region
      %1046 = dma.done [#allocation7], 32
    $region65: #{network_magenta_forward.1} parent=1 // pred_fallthru
      _
    // Predicated region
    $region66: #{network_magenta_forward.1} parent=1 // pred_check
      _
    $region67: #{network_magenta_forward.1} parent=1 // pred_check_branch
      %1048 = sbr.rel (0) target = $region69
    $region68: #{network_magenta_forward.1} parent=1 // pred_region
      %1050 = dma.done [#allocation13], 32
    $region69: #{network_magenta_forward.1} parent=1 // pred_fallthru
      _
    %1051 = vsyncpa [#allocation6], 1
    %1052 = vsyncpa [#allocation9], 1
    %1053 = vsyncpa [#allocation7], 1
    %1054 = vsyncpa [#allocation13], 1

</llo_original>
